<compile_context>
chip_gen: v6e
topology: v6e:2x2x1
jax: 0.10.0
libtpu: 0.0.40
codegen_flags: <defaults>
</compile_context>

<pallas_src>
import functools
import numpy as np
import jax
import jax.numpy as jnp
from jax.experimental import pallas as pl
from jax.experimental.pallas import tpu as pltpu


def _set_encoder_kernel(n_shuffle, compute_dtype,
                        state_ref, len_ref,
                        w1_ref, b1_ref, w2_ref, b2_ref,
                        wa_ref, wlstm_ref, blstm_ref,
                        att_out_ref, qt_out_ref):
    Bt, S, D = state_ref.shape
    E = w2_ref.shape[1]
    H = wa_ref.shape[1]

    # ---- embedder MLP (Linear -> ReLU -> Linear) applied per timestep ----
    # S is a multiple of 8 so this flatten is layout-preserving (no VMEM copy).
    x = state_ref[...].reshape(Bt * S, D).astype(compute_dtype)
    h1 = jnp.dot(x, w1_ref[...], preferred_element_type=jnp.float32) + b1_ref[...]
    h1 = jnp.maximum(h1, 0.0)
    emb = (jnp.dot(h1.astype(compute_dtype), w2_ref[...],
                   preferred_element_type=jnp.float32) + b2_ref[...])        # (Bt*S, E) f32

    # ---- hoisted attention projection: (emb @ Wa) computed once, not per shuffle ----
    emb_wa = jnp.dot(emb.astype(compute_dtype), wa_ref[...],
                     preferred_element_type=jnp.float32)                     # (Bt*S, H) f32

    emb3 = emb.reshape(Bt, S, E)
    emb_wa3 = emb_wa.reshape(Bt, S, H)

    # ---- validity mask from lengths (replaces pack/pad + -inf masking) ----
    length = len_ref[...]                                                    # (Bt, 1) int32
    pos = jax.lax.broadcasted_iota(jnp.int32, (Bt, S), 1)
    mask = pos < length                                                      # (Bt, S)

    qt = jnp.zeros((Bt, H), jnp.float32)
    ct = jnp.zeros((Bt, H), jnp.float32)
    attended = jnp.zeros((Bt, E), jnp.float32)
    neg = jnp.float32(-1e30)

    for _ in range(n_shuffle):
        # logits[b,s] = sum_h (emb @ Wa)[b,s,h] * qt[b,h]   (== emb . (Wa qt))
        logits = jnp.sum(emb_wa3 * qt[:, None, :], axis=2)                   # (Bt, S)
        logits = jnp.where(mask, logits, neg)
        m_max = jnp.max(logits, axis=1, keepdims=True)
        p = jnp.where(mask, jnp.exp(logits - m_max), 0.0)
        denom = jnp.sum(p, axis=1, keepdims=True)
        weight = p * pl.reciprocal(jnp.maximum(denom, jnp.float32(1e-30)),
                                   approx=True)                              # (Bt, S)
        attended = jnp.sum(weight[:, :, None] * emb3, axis=1)                # (Bt, E)

        # ---- fused LSTMCell: gates = [attended, qt] @ [Wih;Whh]^T + (bih+bhh) ----
        xh = jnp.concatenate([attended, qt], axis=1).astype(compute_dtype)   # (Bt, E+H)
        gates = (jnp.dot(xh, wlstm_ref[...], preferred_element_type=jnp.float32)
                 + blstm_ref[...])                                           # (Bt, 4H) f32
        i_g = jax.nn.sigmoid(gates[:, 0:H])
        f_g = jax.nn.sigmoid(gates[:, H:2 * H])
        g_g = jnp.tanh(gates[:, 2 * H:3 * H])
        o_g = jax.nn.sigmoid(gates[:, 3 * H:4 * H])
        ct = f_g * ct + i_g * g_g
        qt = o_g * jnp.tanh(ct)

    # rows with length == 0 produce zeros (pack "nonzero" + zero-padding of output)
    valid = (length > 0).astype(jnp.float32)                                 # (Bt, 1)
    att_out_ref[...] = attended * valid
    qt_out_ref[...] = qt * valid


def set_encoder_forward(state, length, params, n_shuffle, *,
                        block_b=8, use_bf16=True):
    """state: (B, S, D) f32, length: (B,) int (sorted descending)."""
    B, S, D = state.shape
    w1, b1, w2, b2, wa, wih, bih, whh, bhh = params
    H1 = w1.shape[0]
    E = w2.shape[0]
    H = whh.shape[1]

    mm_dtype = jnp.bfloat16 if use_bf16 else jnp.float32

    # ---- host-side weight layout prep: (in, out) layout, fused LSTM weights ----
    w1t = w1.T.astype(mm_dtype)                                         # (D, H1)
    w2t = w2.T.astype(mm_dtype)                                         # (H1, E)
    wa_eh = wa.astype(mm_dtype)                                         # (E, H): emb @ Wa
    w_lstm = jnp.concatenate([wih, whh], axis=1).T.astype(mm_dtype)     # (E+H, 4H)
    b_lstm = (bih + bhh).reshape(1, 4 * H).astype(jnp.float32)
    b1r = b1.reshape(1, H1).astype(jnp.float32)
    b2r = b2.reshape(1, E).astype(jnp.float32)

    # ---- batch tile: multiple of 8 so 2-D (B, x) blocks satisfy (8,128) tiling ----
    bt = max(8, ((block_b + 7) // 8) * 8)
    Bp = ((B + bt - 1) // bt) * bt
    if Bp != B:
        state = jnp.pad(state, ((0, Bp - B), (0, 0), (0, 0)))
        length = jnp.pad(length, (0, Bp - B))
    len2d = length.reshape(Bp, 1).astype(jnp.int32)

    kernel = functools.partial(_set_encoder_kernel, n_shuffle, mm_dtype)

    att, qt = pl.pallas_call(
        kernel,
        out_shape=(jax.ShapeDtypeStruct((Bp, E), jnp.float32),
                   jax.ShapeDtypeStruct((Bp, H), jnp.float32)),
        grid=(Bp // bt,),
        in_specs=[
            pl.BlockSpec((bt, S, D), lambda i: (i, 0, 0)),       # state (batch-tiled)
            pl.BlockSpec((bt, 1), lambda i: (i, 0)),             # lengths (batch-tiled)
            pl.BlockSpec((D, H1), lambda i: (0, 0)),             # w1^T
            pl.BlockSpec((1, H1), lambda i: (0, 0)),             # b1
            pl.BlockSpec((H1, E), lambda i: (0, 0)),             # w2^T
            pl.BlockSpec((1, E), lambda i: (0, 0)),              # b2
            pl.BlockSpec((E, H), lambda i: (0, 0)),              # Wa (E,H)
            pl.BlockSpec((E + H, 4 * H), lambda i: (0, 0)),      # fused [Wih;Whh]^T
            pl.BlockSpec((1, 4 * H), lambda i: (0, 0)),          # bih + bhh
        ],
        out_specs=[
            pl.BlockSpec((bt, E), lambda i: (i, 0)),
            pl.BlockSpec((bt, H), lambda i: (i, 0)),
        ],
        compiler_params=pltpu.CompilerParams(
            dimension_semantics=("parallel",)),
    )(state, len2d, w1t, b1r, w2t, b2r, wa_eh, w_lstm, b_lstm)

    return jnp.concatenate([att, qt], axis=1)[:B]


def set_encoder_ref(state, length, params, n_shuffle):
    """Pure-JAX f32 reference mirroring the PyTorch forward (simple attention)."""
    w1, b1, w2, b2, wa, wih, bih, whh, bhh = params
    B, S, D = state.shape
    E = w2.shape[0]
    H = whh.shape[1]
    emb = jnp.maximum(state.reshape(B * S, D) @ w1.T + b1, 0.0) @ w2.T + b2
    emb = emb.reshape(B, S, E)
    mask = jnp.arange(S)[None, :] < length[:, None]
    qt = jnp.zeros((B, H), jnp.float32)
    ct = jnp.zeros((B, H), jnp.float32)
    attended = jnp.zeros((B, E), jnp.float32)
    for _ in range(n_shuffle):
        q = qt @ wa.T
        logits = jnp.where(mask, jnp.einsum('bse,be->bs', emb, q), -1e30)
        p = jnp.exp(logits - logits.max(1, keepdims=True))
        p = jnp.where(mask, p, 0.0)
        weight = p / jnp.maximum(p.sum(1, keepdims=True), 1e-30)
        attended = jnp.einsum('bs,bse->be', weight, emb)
        gates = attended @ wih.T + bih + qt @ whh.T + bhh
        i_g = jax.nn.sigmoid(gates[:, :H])
        f_g = jax.nn.sigmoid(gates[:, H:2 * H])
        g_g = jnp.tanh(gates[:, 2 * H:3 * H])
        o_g = jax.nn.sigmoid(gates[:, 3 * H:])
        ct = f_g * ct + i_g * g_g
        qt = o_g * jnp.tanh(ct)
    enc = jnp.concatenate([attended, qt], axis=1)
    return enc * (length[:, None] > 0).astype(jnp.float32)


if __name__ == "__main__":
    # SetEncoder(input_dim=8, n_feature=8, embedder_hidden_sizes=[32],
    #            embedded_dim=32, lstm_size=16, n_shuffle=3, simple=True)
    B, S, D = 16, 8, 8
    H1, E, H = 32, 32, 16
    N_SHUFFLE = 3

    key = jax.random.PRNGKey(0)
    ks = jax.random.split(key, 10)

    def uinit(k, shape, fan_in):
        bound = 1.0 / np.sqrt(fan_in)
        return jax.random.uniform(k, shape, jnp.float32, -bound, bound)

    w1 = uinit(ks[0], (H1, D), D)
    b1 = uinit(ks[1], (H1,), D)
    w2 = uinit(ks[2], (E, H1), H1)
    b2 = uinit(ks[3], (E,), H1)
    wa = uinit(ks[4], (E, H), H)           # attention: Linear(lstm_size -> embedded_dim, no bias)
    wih = uinit(ks[5], (4 * H, E), H)
    bih = uinit(ks[6], (4 * H,), H)
    whh = uinit(ks[7], (4 * H, H), H)
    bhh = uinit(ks[8], (4 * H,), H)
    params = (w1, b1, w2, b2, wa, wih, bih, whh, bhh)

    state = jax.random.normal(ks[9], (B, S, D), jnp.float32)
    # lengths sorted descending (pack_padded_sequence requirement); trailing rows empty
    length = jnp.clip(S - jnp.arange(B, dtype=jnp.int32), 0, S)

    out = jax.block_until_ready(
        set_encoder_forward(state, length, params, N_SHUFFLE, block_b=8))

    ref = set_encoder_ref(state, length, params, N_SHUFFLE)
    np.testing.assert_allclose(np.asarray(out), np.asarray(ref), rtol=2e-2, atol=2e-2)

    print("KERNEL_OK")
</pallas_src>

<mosaic_0001>
module attributes {stable_mosaic.version = 11 : i64} {
  func.func @_set_encoder_kernel(%arg0: i32, %arg1: memref<8x8x8xf32, #tpu.memory_space<vmem>>, %arg2: memref<8x1xi32, #tpu.memory_space<vmem>>, %arg3: memref<8x32xbf16, #tpu.memory_space<vmem>>, %arg4: memref<1x32xf32, #tpu.memory_space<vmem>>, %arg5: memref<32x32xbf16, #tpu.memory_space<vmem>>, %arg6: memref<1x32xf32, #tpu.memory_space<vmem>>, %arg7: memref<32x16xbf16, #tpu.memory_space<vmem>>, %arg8: memref<48x64xbf16, #tpu.memory_space<vmem>>, %arg9: memref<1x64xf32, #tpu.memory_space<vmem>>, %arg10: memref<8x32xf32, #tpu.memory_space<vmem>>, %arg11: memref<8x16xf32, #tpu.memory_space<vmem>>) attributes {dimension_semantics = [#tpu.dimension_semantics<parallel>], iteration_bounds = array<i64: 2>, scalar_prefetch = 0 : i64, scratch_operands = 0 : i64, tpu.core_type = #tpu.core_type<tc>, window_params = [{transform_indices = @transform_0, window_bounds = array<i64: 8, 8, 8>}, {transform_indices = @transform_1, window_bounds = array<i64: 8, 1>}, {pipeline_mode = #tpu.pipeline_mode<synchronous>, transform_indices = @transform_2, window_bounds = array<i64: 8, 32>}, {pipeline_mode = #tpu.pipeline_mode<synchronous>, transform_indices = @transform_3, window_bounds = array<i64: 1, 32>}, {pipeline_mode = #tpu.pipeline_mode<synchronous>, transform_indices = @transform_4, window_bounds = array<i64: 32, 32>}, {pipeline_mode = #tpu.pipeline_mode<synchronous>, transform_indices = @transform_5, window_bounds = array<i64: 1, 32>}, {pipeline_mode = #tpu.pipeline_mode<synchronous>, transform_indices = @transform_6, window_bounds = array<i64: 32, 16>}, {pipeline_mode = #tpu.pipeline_mode<synchronous>, transform_indices = @transform_7, window_bounds = array<i64: 48, 64>}, {pipeline_mode = #tpu.pipeline_mode<synchronous>, transform_indices = @transform_8, window_bounds = array<i64: 1, 64>}, {transform_indices = @transform_9, window_bounds = array<i64: 8, 32>}, {transform_indices = @transform_10, window_bounds = array<i64: 8, 16>}]} {
    %c0 = arith.constant 0 : index
    %c0_0 = arith.constant 0 : index
    %c0_1 = arith.constant 0 : index
    %0 = vector.load %arg1[%c0, %c0_0, %c0_1] : memref<8x8x8xf32, #tpu.memory_space<vmem>>, vector<8x8x8xf32>
    %1 = vector.shape_cast %0 : vector<8x8x8xf32> to vector<64x8xf32>
    %2 = arith.truncf %1 : vector<64x8xf32> to vector<64x8xbf16>
    %c0_2 = arith.constant 0 : index
    %c0_3 = arith.constant 0 : index
    %3 = vector.load %arg3[%c0_2, %c0_3] : memref<8x32xbf16, #tpu.memory_space<vmem>>, vector<8x32xbf16>
    %cst = arith.constant dense<0.000000e+00> : vector<64x32xf32>
    %4 = tpu.matmul %2, %3, %cst {dimension_numbers = #tpu.dot_dimension_numbers<[1], [0], [0], [1], [0, 0, 1, 1], [], []>} : vector<64x8xbf16>, vector<8x32xbf16>, vector<64x32xf32> -> vector<64x32xf32>
    %c0_4 = arith.constant 0 : index
    %c0_5 = arith.constant 0 : index
    %5 = vector.load %arg4[%c0_4, %c0_5] : memref<1x32xf32, #tpu.memory_space<vmem>>, vector<1x32xf32>
    %6 = vector.broadcast %5 : vector<1x32xf32> to vector<64x32xf32>
    %7 = arith.addf %4, %6 : vector<64x32xf32>
    %cst_6 = arith.constant 0.000000e+00 : f32
    %8 = vector.broadcast %cst_6 : f32 to vector<64x32xf32>
    %9 = arith.maximumf %7, %8 : vector<64x32xf32>
    %10 = arith.truncf %9 : vector<64x32xf32> to vector<64x32xbf16>
    %c0_7 = arith.constant 0 : index
    %c0_8 = arith.constant 0 : index
    %11 = vector.load %arg5[%c0_7, %c0_8] : memref<32x32xbf16, #tpu.memory_space<vmem>>, vector<32x32xbf16>
    %cst_9 = arith.constant dense<0.000000e+00> : vector<64x32xf32>
    %12 = tpu.matmul %10, %11, %cst_9 {dimension_numbers = #tpu.dot_dimension_numbers<[1], [0], [0], [1], [0, 0, 1, 1], [], []>} : vector<64x32xbf16>, vector<32x32xbf16>, vector<64x32xf32> -> vector<64x32xf32>
    %c0_10 = arith.constant 0 : index
    %c0_11 = arith.constant 0 : index
    %13 = vector.load %arg6[%c0_10, %c0_11] : memref<1x32xf32, #tpu.memory_space<vmem>>, vector<1x32xf32>
    %14 = vector.broadcast %13 : vector<1x32xf32> to vector<64x32xf32>
    %15 = arith.addf %12, %14 : vector<64x32xf32>
    %16 = arith.truncf %15 : vector<64x32xf32> to vector<64x32xbf16>
    %c0_12 = arith.constant 0 : index
    %c0_13 = arith.constant 0 : index
    %17 = vector.load %arg7[%c0_12, %c0_13] : memref<32x16xbf16, #tpu.memory_space<vmem>>, vector<32x16xbf16>
    %cst_14 = arith.constant dense<0.000000e+00> : vector<64x16xf32>
    %18 = tpu.matmul %16, %17, %cst_14 {dimension_numbers = #tpu.dot_dimension_numbers<[1], [0], [0], [1], [0, 0, 1, 1], [], []>} : vector<64x32xbf16>, vector<32x16xbf16>, vector<64x16xf32> -> vector<64x16xf32>
    %19 = vector.shape_cast %15 : vector<64x32xf32> to vector<8x8x32xf32>
    %20 = vector.shape_cast %18 : vector<64x16xf32> to vector<8x8x16xf32>
    %c0_15 = arith.constant 0 : index
    %c0_16 = arith.constant 0 : index
    %21 = vector.load %arg2[%c0_15, %c0_16] : memref<8x1xi32, #tpu.memory_space<vmem>>, vector<8x1xi32>
    %22 = tpu.iota {dimensions = array<i32: 1>} : vector<8x8xi32>
    %23 = vector.broadcast %21 : vector<8x1xi32> to vector<8x8xi32>
    %24 = arith.cmpi slt, %22, %23 : vector<8x8xi32>
    %cst_17 = arith.constant 0.000000e+00 : f32
    %25 = vector.broadcast %cst_17 : f32 to vector<8x16xf32>
    %cst_18 = arith.constant 0.000000e+00 : f32
    %26 = vector.broadcast %cst_18 : f32 to vector<8x16xf32>
    %27 = vector.shape_cast %25 : vector<8x16xf32> to vector<8x1x16xf32>
    %28 = vector.broadcast %27 : vector<8x1x16xf32> to vector<8x8x16xf32>
    %29 = arith.mulf %20, %28 : vector<8x8x16xf32>
    %cst_19 = arith.constant dense<0.000000e+00> : vector<8x8xf32>
    %30 = vector.multi_reduction <add>, %29, %cst_19 [2] : vector<8x8x16xf32> to vector<8x8xf32>
    %cst_20 = arith.constant -1.000000e+30 : f32
    %31 = vector.broadcast %cst_20 : f32 to vector<8x8xf32>
    %32 = arith.select %24, %30, %31 : vector<8x8xi1>, vector<8x8xf32>
    %cst_21 = arith.constant dense<0xFF800000> : vector<8xf32>
    %33 = vector.multi_reduction <maximumf>, %32, %cst_21 [1] : vector<8x8xf32> to vector<8xf32>
    %34 = vector.shape_cast %33 : vector<8xf32> to vector<8x1xf32>
    %35 = vector.broadcast %34 : vector<8x1xf32> to vector<8x8xf32>
    %36 = arith.subf %32, %35 : vector<8x8xf32>
    %37 = math.exp %36 : vector<8x8xf32>
    %cst_22 = arith.constant 0.000000e+00 : f32
    %38 = vector.broadcast %cst_22 : f32 to vector<8x8xf32>
    %39 = arith.select %24, %37, %38 : vector<8x8xi1>, vector<8x8xf32>
    %cst_23 = arith.constant dense<0.000000e+00> : vector<8xf32>
    %40 = vector.multi_reduction <add>, %39, %cst_23 [1] : vector<8x8xf32> to vector<8xf32>
    %41 = vector.shape_cast %40 : vector<8xf32> to vector<8x1xf32>
    %cst_24 = arith.constant 1.000000e-30 : f32
    %42 = vector.broadcast %cst_24 : f32 to vector<8x1xf32>
    %43 = arith.maximumf %41, %42 : vector<8x1xf32>
    %44 = tpu.reciprocal %43 {approx = true} : vector<8x1xf32> -> vector<8x1xf32>
    %45 = vector.broadcast %44 : vector<8x1xf32> to vector<8x8xf32>
    %46 = arith.mulf %39, %45 : vector<8x8xf32>
    %47 = vector.shape_cast %46 : vector<8x8xf32> to vector<8x8x1xf32>
    %48 = vector.broadcast %47 : vector<8x8x1xf32> to vector<8x8x32xf32>
    %49 = arith.mulf %48, %19 : vector<8x8x32xf32>
    %cst_25 = arith.constant dense<0.000000e+00> : vector<8x32xf32>
    %50 = vector.multi_reduction <add>, %49, %cst_25 [1] : vector<8x8x32xf32> to vector<8x32xf32>
    %51 = tpu.concatenate %50, %25 in 1 : vector<8x32xf32>, vector<8x16xf32> -> vector<8x48xf32>
    %52 = arith.truncf %51 : vector<8x48xf32> to vector<8x48xbf16>
    %c0_26 = arith.constant 0 : index
    %c0_27 = arith.constant 0 : index
    %53 = vector.load %arg8[%c0_26, %c0_27] : memref<48x64xbf16, #tpu.memory_space<vmem>>, vector<48x64xbf16>
    %cst_28 = arith.constant dense<0.000000e+00> : vector<8x64xf32>
    %54 = tpu.matmul %52, %53, %cst_28 {dimension_numbers = #tpu.dot_dimension_numbers<[1], [0], [0], [1], [0, 0, 1, 1], [], []>} : vector<8x48xbf16>, vector<48x64xbf16>, vector<8x64xf32> -> vector<8x64xf32>
    %c0_29 = arith.constant 0 : index
    %c0_30 = arith.constant 0 : index
    %55 = vector.load %arg9[%c0_29, %c0_30] : memref<1x64xf32, #tpu.memory_space<vmem>>, vector<1x64xf32>
    %56 = vector.broadcast %55 : vector<1x64xf32> to vector<8x64xf32>
    %57 = arith.addf %54, %56 : vector<8x64xf32>
    %58 = vector.extract_strided_slice %57 {offsets = [0, 0], sizes = [8, 16], strides = [1, 1]} : vector<8x64xf32> to vector<8x16xf32>
    %59 = arith.negf %58 : vector<8x16xf32>
    %60 = math.exp %59 : vector<8x16xf32>
    %cst_31 = arith.constant 1.000000e+00 : f32
    %61 = vector.broadcast %cst_31 : f32 to vector<8x16xf32>
    %62 = arith.addf %61, %60 : vector<8x16xf32>
    %63 = arith.divf %61, %62 : vector<8x16xf32>
    %64 = vector.extract_strided_slice %57 {offsets = [0, 16], sizes = [8, 16], strides = [1, 1]} : vector<8x64xf32> to vector<8x16xf32>
    %65 = arith.negf %64 : vector<8x16xf32>
    %66 = math.exp %65 : vector<8x16xf32>
    %cst_32 = arith.constant 1.000000e+00 : f32
    %67 = vector.broadcast %cst_32 : f32 to vector<8x16xf32>
    %68 = arith.addf %67, %66 : vector<8x16xf32>
    %69 = arith.divf %67, %68 : vector<8x16xf32>
    %70 = vector.extract_strided_slice %57 {offsets = [0, 32], sizes = [8, 16], strides = [1, 1]} : vector<8x64xf32> to vector<8x16xf32>
    %71 = math.tanh %70 : vector<8x16xf32>
    %72 = vector.extract_strided_slice %57 {offsets = [0, 48], sizes = [8, 16], strides = [1, 1]} : vector<8x64xf32> to vector<8x16xf32>
    %73 = arith.negf %72 : vector<8x16xf32>
    %74 = math.exp %73 : vector<8x16xf32>
    %cst_33 = arith.constant 1.000000e+00 : f32
    %75 = vector.broadcast %cst_33 : f32 to vector<8x16xf32>
    %76 = arith.addf %75, %74 : vector<8x16xf32>
    %77 = arith.divf %75, %76 : vector<8x16xf32>
    %78 = arith.mulf %69, %26 : vector<8x16xf32>
    %79 = arith.mulf %63, %71 : vector<8x16xf32>
    %80 = arith.addf %78, %79 : vector<8x16xf32>
    %81 = math.tanh %80 : vector<8x16xf32>
    %82 = arith.mulf %77, %81 : vector<8x16xf32>
    %83 = vector.shape_cast %82 : vector<8x16xf32> to vector<8x1x16xf32>
    %84 = vector.broadcast %83 : vector<8x1x16xf32> to vector<8x8x16xf32>
    %85 = arith.mulf %20, %84 : vector<8x8x16xf32>
    %cst_34 = arith.constant dense<0.000000e+00> : vector<8x8xf32>
    %86 = vector.multi_reduction <add>, %85, %cst_34 [2] : vector<8x8x16xf32> to vector<8x8xf32>
    %cst_35 = arith.constant -1.000000e+30 : f32
    %87 = vector.broadcast %cst_35 : f32 to vector<8x8xf32>
    %88 = arith.select %24, %86, %87 : vector<8x8xi1>, vector<8x8xf32>
    %cst_36 = arith.constant dense<0xFF800000> : vector<8xf32>
    %89 = vector.multi_reduction <maximumf>, %88, %cst_36 [1] : vector<8x8xf32> to vector<8xf32>
    %90 = vector.shape_cast %89 : vector<8xf32> to vector<8x1xf32>
    %91 = vector.broadcast %90 : vector<8x1xf32> to vector<8x8xf32>
    %92 = arith.subf %88, %91 : vector<8x8xf32>
    %93 = math.exp %92 : vector<8x8xf32>
    %cst_37 = arith.constant 0.000000e+00 : f32
    %94 = vector.broadcast %cst_37 : f32 to vector<8x8xf32>
    %95 = arith.select %24, %93, %94 : vector<8x8xi1>, vector<8x8xf32>
    %cst_38 = arith.constant dense<0.000000e+00> : vector<8xf32>
    %96 = vector.multi_reduction <add>, %95, %cst_38 [1] : vector<8x8xf32> to vector<8xf32>
    %97 = vector.shape_cast %96 : vector<8xf32> to vector<8x1xf32>
    %cst_39 = arith.constant 1.000000e-30 : f32
    %98 = vector.broadcast %cst_39 : f32 to vector<8x1xf32>
    %99 = arith.maximumf %97, %98 : vector<8x1xf32>
    %100 = tpu.reciprocal %99 {approx = true} : vector<8x1xf32> -> vector<8x1xf32>
    %101 = vector.broadcast %100 : vector<8x1xf32> to vector<8x8xf32>
    %102 = arith.mulf %95, %101 : vector<8x8xf32>
    %103 = vector.shape_cast %102 : vector<8x8xf32> to vector<8x8x1xf32>
    %104 = vector.broadcast %103 : vector<8x8x1xf32> to vector<8x8x32xf32>
    %105 = arith.mulf %104, %19 : vector<8x8x32xf32>
    %cst_40 = arith.constant dense<0.000000e+00> : vector<8x32xf32>
    %106 = vector.multi_reduction <add>, %105, %cst_40 [1] : vector<8x8x32xf32> to vector<8x32xf32>
    %107 = tpu.concatenate %106, %82 in 1 : vector<8x32xf32>, vector<8x16xf32> -> vector<8x48xf32>
    %108 = arith.truncf %107 : vector<8x48xf32> to vector<8x48xbf16>
    %c0_41 = arith.constant 0 : index
    %c0_42 = arith.constant 0 : index
    %109 = vector.load %arg8[%c0_41, %c0_42] : memref<48x64xbf16, #tpu.memory_space<vmem>>, vector<48x64xbf16>
    %cst_43 = arith.constant dense<0.000000e+00> : vector<8x64xf32>
    %110 = tpu.matmul %108, %109, %cst_43 {dimension_numbers = #tpu.dot_dimension_numbers<[1], [0], [0], [1], [0, 0, 1, 1], [], []>} : vector<8x48xbf16>, vector<48x64xbf16>, vector<8x64xf32> -> vector<8x64xf32>
    %c0_44 = arith.constant 0 : index
    %c0_45 = arith.constant 0 : index
    %111 = vector.load %arg9[%c0_44, %c0_45] : memref<1x64xf32, #tpu.memory_space<vmem>>, vector<1x64xf32>
    %112 = vector.broadcast %111 : vector<1x64xf32> to vector<8x64xf32>
    %113 = arith.addf %110, %112 : vector<8x64xf32>
    %114 = vector.extract_strided_slice %113 {offsets = [0, 0], sizes = [8, 16], strides = [1, 1]} : vector<8x64xf32> to vector<8x16xf32>
    %115 = arith.negf %114 : vector<8x16xf32>
    %116 = math.exp %115 : vector<8x16xf32>
    %cst_46 = arith.constant 1.000000e+00 : f32
    %117 = vector.broadcast %cst_46 : f32 to vector<8x16xf32>
    %118 = arith.addf %117, %116 : vector<8x16xf32>
    %119 = arith.divf %117, %118 : vector<8x16xf32>
    %120 = vector.extract_strided_slice %113 {offsets = [0, 16], sizes = [8, 16], strides = [1, 1]} : vector<8x64xf32> to vector<8x16xf32>
    %121 = arith.negf %120 : vector<8x16xf32>
    %122 = math.exp %121 : vector<8x16xf32>
    %cst_47 = arith.constant 1.000000e+00 : f32
    %123 = vector.broadcast %cst_47 : f32 to vector<8x16xf32>
    %124 = arith.addf %123, %122 : vector<8x16xf32>
    %125 = arith.divf %123, %124 : vector<8x16xf32>
    %126 = vector.extract_strided_slice %113 {offsets = [0, 32], sizes = [8, 16], strides = [1, 1]} : vector<8x64xf32> to vector<8x16xf32>
    %127 = math.tanh %126 : vector<8x16xf32>
    %128 = vector.extract_strided_slice %113 {offsets = [0, 48], sizes = [8, 16], strides = [1, 1]} : vector<8x64xf32> to vector<8x16xf32>
    %129 = arith.negf %128 : vector<8x16xf32>
    %130 = math.exp %129 : vector<8x16xf32>
    %cst_48 = arith.constant 1.000000e+00 : f32
    %131 = vector.broadcast %cst_48 : f32 to vector<8x16xf32>
    %132 = arith.addf %131, %130 : vector<8x16xf32>
    %133 = arith.divf %131, %132 : vector<8x16xf32>
    %134 = arith.mulf %125, %80 : vector<8x16xf32>
    %135 = arith.mulf %119, %127 : vector<8x16xf32>
    %136 = arith.addf %134, %135 : vector<8x16xf32>
    %137 = math.tanh %136 : vector<8x16xf32>
    %138 = arith.mulf %133, %137 : vector<8x16xf32>
    %139 = vector.shape_cast %138 : vector<8x16xf32> to vector<8x1x16xf32>
    %140 = vector.broadcast %139 : vector<8x1x16xf32> to vector<8x8x16xf32>
    %141 = arith.mulf %20, %140 : vector<8x8x16xf32>
    %cst_49 = arith.constant dense<0.000000e+00> : vector<8x8xf32>
    %142 = vector.multi_reduction <add>, %141, %cst_49 [2] : vector<8x8x16xf32> to vector<8x8xf32>
    %cst_50 = arith.constant -1.000000e+30 : f32
    %143 = vector.broadcast %cst_50 : f32 to vector<8x8xf32>
    %144 = arith.select %24, %142, %143 : vector<8x8xi1>, vector<8x8xf32>
    %cst_51 = arith.constant dense<0xFF800000> : vector<8xf32>
    %145 = vector.multi_reduction <maximumf>, %144, %cst_51 [1] : vector<8x8xf32> to vector<8xf32>
    %146 = vector.shape_cast %145 : vector<8xf32> to vector<8x1xf32>
    %147 = vector.broadcast %146 : vector<8x1xf32> to vector<8x8xf32>
    %148 = arith.subf %144, %147 : vector<8x8xf32>
    %149 = math.exp %148 : vector<8x8xf32>
    %cst_52 = arith.constant 0.000000e+00 : f32
    %150 = vector.broadcast %cst_52 : f32 to vector<8x8xf32>
    %151 = arith.select %24, %149, %150 : vector<8x8xi1>, vector<8x8xf32>
    %cst_53 = arith.constant dense<0.000000e+00> : vector<8xf32>
    %152 = vector.multi_reduction <add>, %151, %cst_53 [1] : vector<8x8xf32> to vector<8xf32>
    %153 = vector.shape_cast %152 : vector<8xf32> to vector<8x1xf32>
    %cst_54 = arith.constant 1.000000e-30 : f32
    %154 = vector.broadcast %cst_54 : f32 to vector<8x1xf32>
    %155 = arith.maximumf %153, %154 : vector<8x1xf32>
    %156 = tpu.reciprocal %155 {approx = true} : vector<8x1xf32> -> vector<8x1xf32>
    %157 = vector.broadcast %156 : vector<8x1xf32> to vector<8x8xf32>
    %158 = arith.mulf %151, %157 : vector<8x8xf32>
    %159 = vector.shape_cast %158 : vector<8x8xf32> to vector<8x8x1xf32>
    %160 = vector.broadcast %159 : vector<8x8x1xf32> to vector<8x8x32xf32>
    %161 = arith.mulf %160, %19 : vector<8x8x32xf32>
    %cst_55 = arith.constant dense<0.000000e+00> : vector<8x32xf32>
    %162 = vector.multi_reduction <add>, %161, %cst_55 [1] : vector<8x8x32xf32> to vector<8x32xf32>
    %163 = tpu.concatenate %162, %138 in 1 : vector<8x32xf32>, vector<8x16xf32> -> vector<8x48xf32>
    %164 = arith.truncf %163 : vector<8x48xf32> to vector<8x48xbf16>
    %c0_56 = arith.constant 0 : index
    %c0_57 = arith.constant 0 : index
    %165 = vector.load %arg8[%c0_56, %c0_57] : memref<48x64xbf16, #tpu.memory_space<vmem>>, vector<48x64xbf16>
    %cst_58 = arith.constant dense<0.000000e+00> : vector<8x64xf32>
    %166 = tpu.matmul %164, %165, %cst_58 {dimension_numbers = #tpu.dot_dimension_numbers<[1], [0], [0], [1], [0, 0, 1, 1], [], []>} : vector<8x48xbf16>, vector<48x64xbf16>, vector<8x64xf32> -> vector<8x64xf32>
    %c0_59 = arith.constant 0 : index
    %c0_60 = arith.constant 0 : index
    %167 = vector.load %arg9[%c0_59, %c0_60] : memref<1x64xf32, #tpu.memory_space<vmem>>, vector<1x64xf32>
    %168 = vector.broadcast %167 : vector<1x64xf32> to vector<8x64xf32>
    %169 = arith.addf %166, %168 : vector<8x64xf32>
    %170 = vector.extract_strided_slice %169 {offsets = [0, 0], sizes = [8, 16], strides = [1, 1]} : vector<8x64xf32> to vector<8x16xf32>
    %171 = arith.negf %170 : vector<8x16xf32>
    %172 = math.exp %171 : vector<8x16xf32>
    %cst_61 = arith.constant 1.000000e+00 : f32
    %173 = vector.broadcast %cst_61 : f32 to vector<8x16xf32>
    %174 = arith.addf %173, %172 : vector<8x16xf32>
    %175 = arith.divf %173, %174 : vector<8x16xf32>
    %176 = vector.extract_strided_slice %169 {offsets = [0, 16], sizes = [8, 16], strides = [1, 1]} : vector<8x64xf32> to vector<8x16xf32>
    %177 = arith.negf %176 : vector<8x16xf32>
    %178 = math.exp %177 : vector<8x16xf32>
    %cst_62 = arith.constant 1.000000e+00 : f32
    %179 = vector.broadcast %cst_62 : f32 to vector<8x16xf32>
    %180 = arith.addf %179, %178 : vector<8x16xf32>
    %181 = arith.divf %179, %180 : vector<8x16xf32>
    %182 = vector.extract_strided_slice %169 {offsets = [0, 32], sizes = [8, 16], strides = [1, 1]} : vector<8x64xf32> to vector<8x16xf32>
    %183 = math.tanh %182 : vector<8x16xf32>
    %184 = vector.extract_strided_slice %169 {offsets = [0, 48], sizes = [8, 16], strides = [1, 1]} : vector<8x64xf32> to vector<8x16xf32>
    %185 = arith.negf %184 : vector<8x16xf32>
    %186 = math.exp %185 : vector<8x16xf32>
    %cst_63 = arith.constant 1.000000e+00 : f32
    %187 = vector.broadcast %cst_63 : f32 to vector<8x16xf32>
    %188 = arith.addf %187, %186 : vector<8x16xf32>
    %189 = arith.divf %187, %188 : vector<8x16xf32>
    %190 = arith.mulf %181, %136 : vector<8x16xf32>
    %191 = arith.mulf %175, %183 : vector<8x16xf32>
    %192 = arith.addf %190, %191 : vector<8x16xf32>
    %193 = math.tanh %192 : vector<8x16xf32>
    %194 = arith.mulf %189, %193 : vector<8x16xf32>
    %c0_i32 = arith.constant 0 : i32
    %195 = vector.broadcast %c0_i32 : i32 to vector<8x1xi32>
    %196 = arith.cmpi sgt, %21, %195 : vector<8x1xi32>
    %197 = arith.extui %196 : vector<8x1xi1> to vector<8x1xi32>
    %198 = arith.sitofp %197 : vector<8x1xi32> to vector<8x1xf32>
    %199 = vector.broadcast %198 : vector<8x1xf32> to vector<8x32xf32>
    %200 = arith.mulf %162, %199 : vector<8x32xf32>
    %c0_64 = arith.constant 0 : index
    %c0_65 = arith.constant 0 : index
    %201 = vector.load %arg10[%c0_64, %c0_65] : memref<8x32xf32, #tpu.memory_space<vmem>>, vector<8x32xf32>
    tpu.vector_store %arg10[%c0_64, %c0_65], %200 {strides = array<i32>} : memref<8x32xf32, #tpu.memory_space<vmem>>, vector<8x32xf32>,
    %202 = vector.broadcast %198 : vector<8x1xf32> to vector<8x16xf32>
    %203 = arith.mulf %194, %202 : vector<8x16xf32>
    %c0_66 = arith.constant 0 : index
    %c0_67 = arith.constant 0 : index
    %204 = vector.load %arg11[%c0_66, %c0_67] : memref<8x16xf32, #tpu.memory_space<vmem>>, vector<8x16xf32>
    tpu.vector_store %arg11[%c0_66, %c0_67], %203 {strides = array<i32>} : memref<8x16xf32, #tpu.memory_space<vmem>>, vector<8x16xf32>,
    return
  }
  func.func @transform_0(%arg0: i32) -> (i32, i32, i32) {
    %c0_i32 = arith.constant 0 : i32
    %c0_i32_0 = arith.constant 0 : i32
    %c0_i32_1 = arith.constant 0 : i32
    return %arg0, %c0_i32, %c0_i32_0 : i32, i32, i32
  }
  func.func @transform_1(%arg0: i32) -> (i32, i32) {
    %c0_i32 = arith.constant 0 : i32
    %c0_i32_0 = arith.constant 0 : i32
    return %arg0, %c0_i32 : i32, i32
  }
  func.func @transform_2(%arg0: i32) -> (i32, i32) {
    %c0_i32 = arith.constant 0 : i32
    %c0_i32_0 = arith.constant 0 : i32
    %c0_i32_1 = arith.constant 0 : i32
    return %c0_i32, %c0_i32_0 : i32, i32
  }
  func.func @transform_3(%arg0: i32) -> (i32, i32) {
    %c0_i32 = arith.constant 0 : i32
    %c0_i32_0 = arith.constant 0 : i32
    %c0_i32_1 = arith.constant 0 : i32
    return %c0_i32, %c0_i32_0 : i32, i32
  }
  func.func @transform_4(%arg0: i32) -> (i32, i32) {
    %c0_i32 = arith.constant 0 : i32
    %c0_i32_0 = arith.constant 0 : i32
    %c0_i32_1 = arith.constant 0 : i32
    return %c0_i32, %c0_i32_0 : i32, i32
  }
  func.func @transform_5(%arg0: i32) -> (i32, i32) {
    %c0_i32 = arith.constant 0 : i32
    %c0_i32_0 = arith.constant 0 : i32
    %c0_i32_1 = arith.constant 0 : i32
    return %c0_i32, %c0_i32_0 : i32, i32
  }
  func.func @transform_6(%arg0: i32) -> (i32, i32) {
    %c0_i32 = arith.constant 0 : i32
    %c0_i32_0 = arith.constant 0 : i32
    %c0_i32_1 = arith.constant 0 : i32
    return %c0_i32, %c0_i32_0 : i32, i32
  }
  func.func @transform_7(%arg0: i32) -> (i32, i32) {
    %c0_i32 = arith.constant 0 : i32
    %c0_i32_0 = arith.constant 0 : i32
    %c0_i32_1 = arith.constant 0 : i32
    return %c0_i32, %c0_i32_0 : i32, i32
  }
  func.func @transform_8(%arg0: i32) -> (i32, i32) {
    %c0_i32 = arith.constant 0 : i32
    %c0_i32_0 = arith.constant 0 : i32
    %c0_i32_1 = arith.constant 0 : i32
    return %c0_i32, %c0_i32_0 : i32, i32
  }
  func.func @transform_9(%arg0: i32) -> (i32, i32) {
    %c0_i32 = arith.constant 0 : i32
    %c0_i32_0 = arith.constant 0 : i32
    return %arg0, %c0_i32 : i32, i32
  }
  func.func @transform_10(%arg0: i32) -> (i32, i32) {
    %c0_i32 = arith.constant 0 : i32
    %c0_i32_0 = arith.constant 0 : i32
    return %arg0, %c0_i32 : i32, i32
  }
}

</mosaic_0001>

<llo_original>
// kernel: tpu_custom_call.1
$region0: #{tpu_custom_call.1}
  #allocation0 [shape = 'u32[]', space=smem, size = 0x4, offset = 0x4, fixed_abs, tag = 'smem constant byte address 0x4 - core index']
  #allocation1 [shape = 'u32[144,128]{1,0:T(1,128)}', space=vmem, size = 0x12000, scoped, tag = 'internal scratch']
  %s0 = inlined_call_operand.vmem [shape: f32[16,8,8], index: 0, kind: input, shape index: {}]
  %s1 = inlined_call_operand.vmem [shape: s32[16,1], index: 1, kind: input, shape index: {}]
  %s2 = inlined_call_operand.vmem [shape: bf16[8,32], index: 2, kind: input, shape index: {}]
  %s3 = inlined_call_operand.vmem [shape: f32[1,32], index: 3, kind: input, shape index: {}]
  %s4 = inlined_call_operand.vmem [shape: bf16[32,32], index: 4, kind: input, shape index: {}]
  %s5 = inlined_call_operand.vmem [shape: f32[1,32], index: 5, kind: input, shape index: {}]
  %s6 = inlined_call_operand.vmem [shape: bf16[32,16], index: 6, kind: input, shape index: {}]
  %s7 = inlined_call_operand.vmem [shape: bf16[48,64], index: 7, kind: input, shape index: {}]
  %s8 = inlined_call_operand.vmem [shape: f32[1,64], index: 8, kind: input, shape index: {}]
  %s9 = inlined_call_operand.hbm [shape: f32[16,32], index: 9, kind: output, shape index: {0}]
  %s10 = inlined_call_operand.hbm [shape: f32[16,16], index: 10, kind: output, shape index: {1}]
  %11 = xla_tuple %s9, %s10
  %s12 = sld [smem:[#allocation0]]
  $region77: #{tpu_custom_call.1} parent=0
    _
  %s14 = ssub.s32 1, %s12
  %s15 = scalar_select 0, %s14, %s12
  $region1: #{tpu_custom_call.1} parent=0
    #allocation2 [shape = 'u8[8192]{0}', space=vmem, size = 0x2000, scoped, tag = 'output window, operand 0']
    #allocation3 [shape = 's32[2]{0}', space=sflag, size = 0x8, scoped, tag = 'scoped memory for tpu_custom_call.1']
    #allocation4 [shape = 'u8[8192]{0}', space=vmem, size = 0x2000, scoped, tag = 'output window, operand 1']
    #allocation5 [shape = 's32[2]{0}', space=sflag, size = 0x8, scoped, tag = 'scoped memory for tpu_custom_call.1']
    %16 = vsyncpa [#allocation3], 0
    %s17 = scalar_lea.sflag [#allocation3], 1
    %18 = vsyncpa %s17, 0
    %19 = vsyncpa [#allocation5], 0
    %s20 = scalar_lea.sflag [#allocation5], 1
    %21 = vsyncpa %s20, 0
    loop: start=0, step=1, limit=4
    $region2: #{tpu_custom_call.1} parent=1 // loop_pre_header
      _
    $region3: #{tpu_custom_call.1} parent=1 // loop_header
      %s23 = sphi 0, %s27
      %p24 = scmp.ge.s32.totalorder %s23, 4
      %s33 = sphi 0, %s35
      %s36 = sphi 0, %s33
      %s37 = sphi 0, %s36
      %s53 = sphi 0, %s37
      %s59 = sphi 0, %s61
      %s62 = sphi 0, %s59
      %s63 = sphi 0, %s62
      %s79 = sphi 0, %s63
      %s83 = sphi 0, %s83
      %s85 = sphi 0, %s83
      %s86 = sphi 0, %s85
      %s100 = sphi 0, %s86
      %s104 = sphi 0, %s104
      %s106 = sphi 0, %s104
      %s107 = sphi 0, %s106
      %s121 = sphi 0, %s107
      %s125 = sphi 0, %s125
      %s127 = sphi 0, %s125
      %s128 = sphi 0, %s127
      %s142 = sphi 0, %s128
      %s146 = sphi 0, %s146
      %s148 = sphi 0, %s146
      %s149 = sphi 0, %s148
      %s163 = sphi 0, %s149
      %s167 = sphi 0, %s167
      %s169 = sphi 0, %s167
      %s170 = sphi 0, %s169
      %s184 = sphi 0, %s170
      %s188 = sphi 0, %s188
      %s190 = sphi 0, %s188
      %s191 = sphi 0, %s190
      %s205 = sphi 0, %s191
      %s209 = sphi 0, %s209
      %s211 = sphi 0, %s209
      %s212 = sphi 0, %s211
      %s226 = sphi 0, %s212
      %s232 = sphi 0, %s234
      %s235 = sphi 0, %s232
      %s236 = sphi 0, %s235
      %s252 = sphi 0, %s236
      %s258 = sphi 0, %s260
      %s261 = sphi 0, %s258
      %s262 = sphi 0, %s261
      %s278 = sphi 0, %s262
    $region4: #{tpu_custom_call.1} parent=1 // loop_header_branch
      %26 = sbr.rel (%p24) target = $region8
    $region5: #{tpu_custom_call.1} parent=1 // loop_body
      %s28 = ssub.s32 %s23, 1
      %s29 = ssub.s32 %s23, 2
      %s30 = sadd.s32 %s23, 1
      %s31 = ssub.s32 %s23, %s30
      %p32 = scmp.eq.s32.totalorder %s31, 0
      %s34 = sadd.s32 %s33, 1
      %s35 = scalar_select %p32, %s33, %s34
      %p38 = pneg %p32
      %p39 = scmp.eq.s32.totalorder %s23, 1
      %p40 = por %p38, %p39
      %p41 = scmp.ne.s32.totalorder %s33, %s36
      %p42 = scmp.eq.s32.totalorder %s23, 0
      %p43 = por %p41, %p42
      %p44 = scmp.ne.s32.totalorder %s33, %s36
      %p45 = scmp.eq.s32.totalorder %s28, 1
      %p46 = por %p44, %p45
      %p47 = scmp.ne.s32.totalorder %s36, %s37
      %p48 = scmp.eq.s32.totalorder %s28, 0
      %p49 = por %p47, %p48
      %p50 = scmp.ne.s32.totalorder %s36, %s37
      %p51 = scmp.eq.s32.totalorder %s29, 1
      %p52 = por %p50, %p51
      %p54 = scmp.ne.s32.totalorder %s37, %s53
      %p55 = scmp.eq.s32.totalorder %s29, 0
      %p56 = por %p54, %p55
      %s57 = ssub.s32 %s23, %s30
      %p58 = scmp.eq.s32.totalorder %s57, 0
      %s60 = sadd.s32 %s59, 1
      %s61 = scalar_select %p58, %s59, %s60
      %p64 = pneg %p58
      %p65 = scmp.eq.s32.totalorder %s23, 1
      %p66 = por %p64, %p65
      %p67 = scmp.ne.s32.totalorder %s59, %s62
      %p68 = scmp.eq.s32.totalorder %s23, 0
      %p69 = por %p67, %p68
      %p70 = scmp.ne.s32.totalorder %s59, %s62
      %p71 = scmp.eq.s32.totalorder %s28, 1
      %p72 = por %p70, %p71
      %p73 = scmp.ne.s32.totalorder %s62, %s63
      %p74 = scmp.eq.s32.totalorder %s28, 0
      %p75 = por %p73, %p74
      %p76 = scmp.ne.s32.totalorder %s62, %s63
      %p77 = scmp.eq.s32.totalorder %s29, 1
      %p78 = por %p76, %p77
      %p80 = scmp.ne.s32.totalorder %s63, %s79
      %p81 = scmp.eq.s32.totalorder %s29, 0
      %p82 = por %p80, %p81
      %s84 = sadd.s32 %s83, 1
      %p87 = scmp.eq.s32.totalorder %s23, 1
      %p88 = scmp.ne.s32.totalorder %s83, %s85
      %p89 = scmp.eq.s32.totalorder %s23, 0
      %p90 = por %p88, %p89
      %p91 = scmp.ne.s32.totalorder %s83, %s85
      %p92 = scmp.eq.s32.totalorder %s28, 1
      %p93 = por %p91, %p92
      %p94 = scmp.ne.s32.totalorder %s85, %s86
      %p95 = scmp.eq.s32.totalorder %s28, 0
      %p96 = por %p94, %p95
      %p97 = scmp.ne.s32.totalorder %s85, %s86
      %p98 = scmp.eq.s32.totalorder %s29, 1
      %p99 = por %p97, %p98
      %p101 = scmp.ne.s32.totalorder %s86, %s100
      %p102 = scmp.eq.s32.totalorder %s29, 0
      %p103 = por %p101, %p102
      %s105 = sadd.s32 %s104, 1
      %p108 = scmp.eq.s32.totalorder %s23, 1
      %p109 = scmp.ne.s32.totalorder %s104, %s106
      %p110 = scmp.eq.s32.totalorder %s23, 0
      %p111 = por %p109, %p110
      %p112 = scmp.ne.s32.totalorder %s104, %s106
      %p113 = scmp.eq.s32.totalorder %s28, 1
      %p114 = por %p112, %p113
      %p115 = scmp.ne.s32.totalorder %s106, %s107
      %p116 = scmp.eq.s32.totalorder %s28, 0
      %p117 = por %p115, %p116
      %p118 = scmp.ne.s32.totalorder %s106, %s107
      %p119 = scmp.eq.s32.totalorder %s29, 1
      %p120 = por %p118, %p119
      %p122 = scmp.ne.s32.totalorder %s107, %s121
      %p123 = scmp.eq.s32.totalorder %s29, 0
      %p124 = por %p122, %p123
      %s126 = sadd.s32 %s125, 1
      %p129 = scmp.eq.s32.totalorder %s23, 1
      %p130 = scmp.ne.s32.totalorder %s125, %s127
      %p131 = scmp.eq.s32.totalorder %s23, 0
      %p132 = por %p130, %p131
      %p133 = scmp.ne.s32.totalorder %s125, %s127
      %p134 = scmp.eq.s32.totalorder %s28, 1
      %p135 = por %p133, %p134
      %p136 = scmp.ne.s32.totalorder %s127, %s128
      %p137 = scmp.eq.s32.totalorder %s28, 0
      %p138 = por %p136, %p137
      %p139 = scmp.ne.s32.totalorder %s127, %s128
      %p140 = scmp.eq.s32.totalorder %s29, 1
      %p141 = por %p139, %p140
      %p143 = scmp.ne.s32.totalorder %s128, %s142
      %p144 = scmp.eq.s32.totalorder %s29, 0
      %p145 = por %p143, %p144
      %s147 = sadd.s32 %s146, 1
      %p150 = scmp.eq.s32.totalorder %s23, 1
      %p151 = scmp.ne.s32.totalorder %s146, %s148
      %p152 = scmp.eq.s32.totalorder %s23, 0
      %p153 = por %p151, %p152
      %p154 = scmp.ne.s32.totalorder %s146, %s148
      %p155 = scmp.eq.s32.totalorder %s28, 1
      %p156 = por %p154, %p155
      %p157 = scmp.ne.s32.totalorder %s148, %s149
      %p158 = scmp.eq.s32.totalorder %s28, 0
      %p159 = por %p157, %p158
      %p160 = scmp.ne.s32.totalorder %s148, %s149
      %p161 = scmp.eq.s32.totalorder %s29, 1
      %p162 = por %p160, %p161
      %p164 = scmp.ne.s32.totalorder %s149, %s163
      %p165 = scmp.eq.s32.totalorder %s29, 0
      %p166 = por %p164, %p165
      %s168 = sadd.s32 %s167, 1
      %p171 = scmp.eq.s32.totalorder %s23, 1
      %p172 = scmp.ne.s32.totalorder %s167, %s169
      %p173 = scmp.eq.s32.totalorder %s23, 0
      %p174 = por %p172, %p173
      %p175 = scmp.ne.s32.totalorder %s167, %s169
      %p176 = scmp.eq.s32.totalorder %s28, 1
      %p177 = por %p175, %p176
      %p178 = scmp.ne.s32.totalorder %s169, %s170
      %p179 = scmp.eq.s32.totalorder %s28, 0
      %p180 = por %p178, %p179
      %p181 = scmp.ne.s32.totalorder %s169, %s170
      %p182 = scmp.eq.s32.totalorder %s29, 1
      %p183 = por %p181, %p182
      %p185 = scmp.ne.s32.totalorder %s170, %s184
      %p186 = scmp.eq.s32.totalorder %s29, 0
      %p187 = por %p185, %p186
      %s189 = sadd.s32 %s188, 1
      %p192 = scmp.eq.s32.totalorder %s23, 1
      %p193 = scmp.ne.s32.totalorder %s188, %s190
      %p194 = scmp.eq.s32.totalorder %s23, 0
      %p195 = por %p193, %p194
      %p196 = scmp.ne.s32.totalorder %s188, %s190
      %p197 = scmp.eq.s32.totalorder %s28, 1
      %p198 = por %p196, %p197
      %p199 = scmp.ne.s32.totalorder %s190, %s191
      %p200 = scmp.eq.s32.totalorder %s28, 0
      %p201 = por %p199, %p200
      %p202 = scmp.ne.s32.totalorder %s190, %s191
      %p203 = scmp.eq.s32.totalorder %s29, 1
      %p204 = por %p202, %p203
      %p206 = scmp.ne.s32.totalorder %s191, %s205
      %p207 = scmp.eq.s32.totalorder %s29, 0
      %p208 = por %p206, %p207
      %s210 = sadd.s32 %s209, 1
      %p213 = scmp.eq.s32.totalorder %s23, 1
      %p214 = scmp.ne.s32.totalorder %s209, %s211
      %p215 = scmp.eq.s32.totalorder %s23, 0
      %p216 = por %p214, %p215
      %p217 = scmp.ne.s32.totalorder %s209, %s211
      %p218 = scmp.eq.s32.totalorder %s28, 1
      %p219 = por %p217, %p218
      %p220 = scmp.ne.s32.totalorder %s211, %s212
      %p221 = scmp.eq.s32.totalorder %s28, 0
      %p222 = por %p220, %p221
      %p223 = scmp.ne.s32.totalorder %s211, %s212
      %p224 = scmp.eq.s32.totalorder %s29, 1
      %p225 = por %p223, %p224
      %p227 = scmp.ne.s32.totalorder %s212, %s226
      %p228 = scmp.eq.s32.totalorder %s29, 0
      %p229 = por %p227, %p228
      %s230 = ssub.s32 %s23, %s30
      %p231 = scmp.eq.s32.totalorder %s230, 0
      %s233 = sadd.s32 %s232, 1
      %s234 = scalar_select %p231, %s232, %s233
      %p237 = pneg %p231
      %p238 = scmp.eq.s32.totalorder %s23, 1
      %p239 = por %p237, %p238
      %p240 = scmp.ne.s32.totalorder %s232, %s235
      %p241 = scmp.eq.s32.totalorder %s23, 0
      %p242 = por %p240, %p241
      %p243 = scmp.ne.s32.totalorder %s232, %s235
      %p244 = scmp.eq.s32.totalorder %s28, 1
      %p245 = por %p243, %p244
      %p246 = scmp.ne.s32.totalorder %s235, %s236
      %p247 = scmp.eq.s32.totalorder %s28, 0
      %p248 = por %p246, %p247
      %p249 = scmp.ne.s32.totalorder %s235, %s236
      %p250 = scmp.eq.s32.totalorder %s29, 1
      %p251 = por %p249, %p250
      %p253 = scmp.ne.s32.totalorder %s236, %s252
      %p254 = scmp.eq.s32.totalorder %s29, 0
      %p255 = por %p253, %p254
      %s256 = ssub.s32 %s23, %s30
      %p257 = scmp.eq.s32.totalorder %s256, 0
      %s259 = sadd.s32 %s258, 1
      %s260 = scalar_select %p257, %s258, %s259
      %p263 = pneg %p257
      %p264 = scmp.eq.s32.totalorder %s23, 1
      %p265 = por %p263, %p264
      %p266 = scmp.ne.s32.totalorder %s258, %s261
      %p267 = scmp.eq.s32.totalorder %s23, 0
      %p268 = por %p266, %p267
      %p269 = scmp.ne.s32.totalorder %s258, %s261
      %p270 = scmp.eq.s32.totalorder %s28, 1
      %p271 = por %p269, %p270
      %p272 = scmp.ne.s32.totalorder %s261, %s262
      %p273 = scmp.eq.s32.totalorder %s28, 0
      %p274 = por %p272, %p273
      %p275 = scmp.ne.s32.totalorder %s261, %s262
      %p276 = scmp.eq.s32.totalorder %s29, 1
      %p277 = por %p275, %p276
      %p279 = scmp.ne.s32.totalorder %s262, %s278
      %p280 = scmp.eq.s32.totalorder %s29, 0
      %p281 = por %p279, %p280
      %p282 = scmp.le.s32.totalorder 1, %s23
      %p283 = scmp.lt.s32.totalorder %s23, 3
      %p284 = pnand %p282, %p283
      %p285 = pneg %p284
      // Predicated region
      $region9: #{tpu_custom_call.1} parent=5 // pred_check
        _
      $region10: #{tpu_custom_call.1} parent=5 // pred_check_branch
        %287 = sbr.rel (%p284) target = $region12
      $region11: #{tpu_custom_call.1} parent=5 // pred_region
        %s288 = ssub.s32 %s23, 1
        // Predicated region
        $region13: #{tpu_custom_call.1} parent=11 // pred_check
          %p289 = pneg %p96
        $region14: #{tpu_custom_call.1} parent=11 // pred_check_branch
          %291 = sbr.rel (%p289) target = $region16
        $region15: #{tpu_custom_call.1} parent=11 // pred_region
          _
        $region16: #{tpu_custom_call.1} parent=11 // pred_fallthru
          _
        // Predicated region
        $region17: #{tpu_custom_call.1} parent=11 // pred_check
          %p292 = pneg %p117
        $region18: #{tpu_custom_call.1} parent=11 // pred_check_branch
          %294 = sbr.rel (%p292) target = $region20
        $region19: #{tpu_custom_call.1} parent=11 // pred_region
          _
        $region20: #{tpu_custom_call.1} parent=11 // pred_fallthru
          _
        // Predicated region
        $region21: #{tpu_custom_call.1} parent=11 // pred_check
          %p295 = pneg %p138
        $region22: #{tpu_custom_call.1} parent=11 // pred_check_branch
          %297 = sbr.rel (%p295) target = $region24
        $region23: #{tpu_custom_call.1} parent=11 // pred_region
          _
        $region24: #{tpu_custom_call.1} parent=11 // pred_fallthru
          _
        // Predicated region
        $region25: #{tpu_custom_call.1} parent=11 // pred_check
          %p298 = pneg %p159
        $region26: #{tpu_custom_call.1} parent=11 // pred_check_branch
          %300 = sbr.rel (%p298) target = $region28
        $region27: #{tpu_custom_call.1} parent=11 // pred_region
          _
        $region28: #{tpu_custom_call.1} parent=11 // pred_fallthru
          _
        // Predicated region
        $region29: #{tpu_custom_call.1} parent=11 // pred_check
          %p301 = pneg %p180
        $region30: #{tpu_custom_call.1} parent=11 // pred_check_branch
          %303 = sbr.rel (%p301) target = $region32
        $region31: #{tpu_custom_call.1} parent=11 // pred_region
          _
        $region32: #{tpu_custom_call.1} parent=11 // pred_fallthru
          _
        // Predicated region
        $region33: #{tpu_custom_call.1} parent=11 // pred_check
          %p304 = pneg %p201
        $region34: #{tpu_custom_call.1} parent=11 // pred_check_branch
          %306 = sbr.rel (%p304) target = $region36
        $region35: #{tpu_custom_call.1} parent=11 // pred_region
          _
        $region36: #{tpu_custom_call.1} parent=11 // pred_fallthru
          _
        // Predicated region
        $region37: #{tpu_custom_call.1} parent=11 // pred_check
          %p307 = pneg %p222
        $region38: #{tpu_custom_call.1} parent=11 // pred_check_branch
          %309 = sbr.rel (%p307) target = $region40
        $region39: #{tpu_custom_call.1} parent=11 // pred_region
          _
        $region40: #{tpu_custom_call.1} parent=11 // pred_fallthru
          _
      $region12: #{tpu_custom_call.1} parent=5 // pred_fallthru
        _
      %p310 = scmp.lt.s32.totalorder %s23, 2
      // Predicated region
      $region41: #{tpu_custom_call.1} parent=5 // pred_check
        %p311 = pneg %p310
      $region42: #{tpu_custom_call.1} parent=5 // pred_check_branch
        %313 = sbr.rel (%p311) target = $region44
      $region43: #{tpu_custom_call.1} parent=5 // pred_region
        // Predicated region
        $region45: #{tpu_custom_call.1} parent=43 // pred_check
          %p314 = pneg %p43
        $region46: #{tpu_custom_call.1} parent=43 // pred_check_branch
          %316 = sbr.rel (%p314) target = $region48
        $region47: #{tpu_custom_call.1} parent=43 // pred_region
          %s317 = smul.u32 8, %s23
          %p318 = scmp.lt.s32.totalorder %s317, 15
          %s319 = scalar_select %p318, %s317, 15
          %s320 = smul.addr %s319, 8
          %s321 = scalar_lea.vmem %s0, %s320
          %s322 = smul.u32 8, %s23
        $region48: #{tpu_custom_call.1} parent=43 // pred_fallthru
          _
        // Predicated region
        $region49: #{tpu_custom_call.1} parent=43 // pred_check
          %p323 = pneg %p69
        $region50: #{tpu_custom_call.1} parent=43 // pred_check_branch
          %325 = sbr.rel (%p323) target = $region52
        $region51: #{tpu_custom_call.1} parent=43 // pred_region
          %p326 = scmp.lt.s32.totalorder %s23, 1
          %s327 = scalar_select %p326, %s23, 1
          %s328 = smul.addr %s327, 8
          %s329 = scalar_lea.vmem %s1, %s328
        $region52: #{tpu_custom_call.1} parent=43 // pred_fallthru
          _
      $region44: #{tpu_custom_call.1} parent=5 // pred_fallthru
        _
      %p330 = scmp.le.s32.totalorder 1, %s23
      %p331 = scmp.lt.s32.totalorder %s23, 3
      %p332 = pnand %p330, %p331
      %p333 = pneg %p332
      // Predicated region
      $region53: #{tpu_custom_call.1} parent=5 // pred_check
        _
      $region54: #{tpu_custom_call.1} parent=5 // pred_check_branch
        %335 = sbr.rel (%p332) target = $region56
      $region55: #{tpu_custom_call.1} parent=5 // pred_region
        %s336 = ssub.s32 %s23, 1
        %s337 = smul.u32 8, %s28
        %p338 = scmp.lt.s32.totalorder %s337, 15
        %s339 = scalar_select %p338, %s337, 15
        %s340 = smul.addr %s339, 8
        %s341 = scalar_lea.vmem %s0, %s340
        %p342 = pneg %p49
        %p343 = pneg %p46
        %p344 = scmp.lt.s32.totalorder %s28, 1
        %s345 = scalar_select %p344, %s28, 1
        %s346 = smul.addr %s345, 8
        %s347 = scalar_lea.vmem %s1, %s346
        %p348 = pneg %p75
        %p349 = pneg %p72
        %p350 = pneg %p96
        %p351 = pneg %p93
        %p352 = pneg %p117
        %p353 = pneg %p114
        %p354 = pneg %p138
        %p355 = pneg %p135
        %p356 = pneg %p159
        %p357 = pneg %p156
        %p358 = pneg %p180
        %p359 = pneg %p177
        %p360 = pneg %p201
        %p361 = pneg %p198
        %p362 = pneg %p222
        %p363 = pneg %p219
        %p364 = pneg %p248
        %p365 = pneg %p245
        %s366 = sand.u32 %s235, 1
        %s367 = scalar_lea.sflag [#allocation3], %s366
        %s368 = sand.u32 %s235, 1
        %s369 = smul.addr %s368, 8
        %s370 = scalar_lea.vmem [#allocation2], %s369
        %p371 = pneg %p274
        %p372 = pneg %p271
        %s373 = sand.u32 %s261, 1
        %s374 = scalar_lea.sflag [#allocation5], %s373
        %s375 = sand.u32 %s261, 1
        %s376 = smul.addr %s375, 8
        %s377 = scalar_lea.vmem [#allocation4], %s376
        %s378 = smul.u32 8, %s28
        %p379 = scmp.lt.s32.totalorder %s378, 15
        %s380 = scalar_select %p379, %s378, 15
        %s381 = smul.addr %s380, 8
        %s382 = scalar_lea.vmem %s0, %s381
        %s383 = smul.u32 8, %s28
        %p384 = scmp.lt.s32.totalorder %s28, 1
        %s385 = scalar_select %p384, %s28, 1
        %s386 = smul.addr %s385, 8
        %s387 = scalar_lea.vmem %s1, %s386
        %v389 = vld [vmem:[%s382] sm:$0xff]
        %v390 = vld [vmem:[%s382 + $0x8] sm:$0xff]
        %v391 = vld [vmem:[%s382 + $0x10] sm:$0xff]
        %v392 = vld [vmem:[%s382 + $0x18] sm:$0xff]
        %v393 = vld [vmem:[%s382 + $0x20] sm:$0xff]
        %v394 = vld [vmem:[%s382 + $0x28] sm:$0xff]
        %v395 = vld [vmem:[%s382 + $0x30] sm:$0xff]
        %v396 = vld [vmem:[%s382 + $0x38] sm:$0xff]
        %v397 = vpack.c.bf16 %v390, %v389
        %v398 = vpack.c.bf16 %v392, %v391
        %v399 = vpack.c.bf16 %v394, %v393
        %v400 = vpack.c.bf16 %v396, %v395
        %v401 = vld [vmem:[%s2] sm:$0xf]
        %v402 = vld [vmem:[%s3] sm:$0x1]
        %v404 = vlaneseq
        %v405 = vshrl.u32 %v404, 7
        %v406 = vsub.s32 0, %v405
        %v407 = vrot.slane %v402, %v406
        %vm409 = vcmask 64512
        %v411 = vsel %vm409, %v397, 0
        %v414 = vsel %vm409, %v398, 0
        %v417 = vsel %vm409, %v399, 0
        %v420 = vsel %vm409, %v400, 0
        %vm422 = vcmask 1043456
        %v424 = vsel %vm422, %v401, 0
        %426 = vmatprep.subr.bf16.mxu0 0
        %427 = vmatpush1.bf16.msra.mxu0 0
        %428 = vmatprep.subr.bf16.mxu0 0
        %429 = vmatpush1.bf16.msra.mxu0 0
        %430 = vmatprep.subr.bf16.mxu0 0
        %431 = vmatpush1.bf16.msra.mxu0 0
        %432 = vmatprep.subr.bf16.mxu0 0
        %433 = vmatpush1.bf16.msra.mxu0 0
        %434 = vmatprep.subr.bf16.mxu0 0
        %435 = vmatpush1.bf16.msra.mxu0 0
        %436 = vmatprep.subr.bf16.mxu0 0
        %437 = vmatpush1.bf16.msra.mxu0 0
        %438 = vmatprep.subr.bf16.mxu0 0
        %439 = vmatpush1.bf16.msra.mxu0 0
        %440 = vmatprep.subr.bf16.mxu0 0
        %441 = vmatpush1.bf16.msra.mxu0 %v424
        %442 = vmatprep.subr.bf16.mxu0 0
        %443 = vmatpush2.bf16.msra.mxu0 0
        %444 = vmatprep.subr.bf16.mxu0 0
        %445 = vmatpush2.bf16.msra.mxu0 0
        %446 = vmatprep.subr.bf16.mxu0 0
        %447 = vmatpush2.bf16.msra.mxu0 0
        %448 = vmatprep.subr.bf16.mxu0 0
        %449 = vmatpush2.bf16.msra.mxu0 0
        %450 = vmatprep.subr.bf16.mxu0 0
        %451 = vmatpush2.bf16.msra.mxu0 0
        %452 = vmatprep.subr.bf16.mxu0 0
        %453 = vmatpush2.bf16.msra.mxu0 0
        %454 = vmatprep.subr.bf16.mxu0 0
        %455 = vmatpush2.bf16.msra.mxu0 0
        %456 = vmatprep.subr.bf16.mxu0 0
        %457 = vmatpush2.bf16.msra.mxu0 0
        %458 = vmatprep.mubr.bf16.mxu0 0
        %459 = vmatmul.mubr.bf16.gmra.mxu0 %v411
        %v460 = vpop.f32.mrf.mxu0
        %v461 = vadd.f32 %v407, %v460
        %v462 = vpop.f32.mrf.mxu0
        %v463 = vpop.f32.mrf.mxu0
        %v464 = vadd.f32 %v407, %v463
        %v465 = vpop.f32.mrf.mxu0
        %466 = vmatprep.mubr.bf16.mxu0 0
        %467 = vmatmul.mubr.bf16.gmra.mxu0 %v414
        %v468 = vpop.f32.mrf.mxu0
        %v469 = vadd.f32 %v407, %v468
        %v470 = vpop.f32.mrf.mxu0
        %v471 = vpop.f32.mrf.mxu0
        %v472 = vadd.f32 %v407, %v471
        %v473 = vpop.f32.mrf.mxu0
        %474 = vmatprep.mubr.bf16.mxu0 0
        %475 = vmatmul.mubr.bf16.gmra.mxu0 %v417
        %v476 = vpop.f32.mrf.mxu0
        %v477 = vadd.f32 %v407, %v476
        %v478 = vpop.f32.mrf.mxu0
        %v479 = vpop.f32.mrf.mxu0
        %v480 = vadd.f32 %v407, %v479
        %v481 = vpop.f32.mrf.mxu0
        %482 = vmatprep.mubr.bf16.mxu0 0
        %483 = vmatmul.mubr.bf16.gmra.mxu0 %v420
        %v484 = vpop.f32.mrf.mxu0
        %v485 = vadd.f32 %v407, %v484
        %v486 = vpop.f32.mrf.mxu0
        %v487 = vpop.f32.mrf.mxu0
        %v488 = vadd.f32 %v407, %v487
        %v489 = vpop.f32.mrf.mxu0
        %490 = vdwg.mxu0
        %v491 = vmax.f32 %v461, 0.0
        %v492 = vmax.f32 %v464, 0.0
        %v493 = vmax.f32 %v469, 0.0
        %v494 = vmax.f32 %v472, 0.0
        %v495 = vmax.f32 %v477, 0.0
        %v496 = vmax.f32 %v480, 0.0
        %v497 = vmax.f32 %v485, 0.0
        %v498 = vmax.f32 %v488, 0.0
        %v499 = vpack.c.bf16 %v492, %v491
        %v500 = vpack.c.bf16 %v494, %v493
        %v501 = vpack.c.bf16 %v496, %v495
        %v502 = vpack.c.bf16 %v498, %v497
        %v503 = vld [vmem:[%s4] sm:$0xf]
        %v504 = vld [vmem:[%s4 + $0x4] sm:$0xf]
        %v505 = vld [vmem:[%s4 + $0x8] sm:$0xf]
        %v506 = vld [vmem:[%s4 + $0xc] sm:$0xf]
        %v507 = vld [vmem:[%s5] sm:$0x1]
        %v509 = vlaneseq
        %v510 = vshrl.u32 %v509, 7
        %v511 = vsub.s32 0, %v510
        %v512 = vrot.slane %v507, %v511
        %v518 = vunpack.c.l.b16 %v503
        %v519 = vunpack.c.l.b16 %v504
        %v520 = vunpack.c.l.b16 %v505
        %v521 = vunpack.c.l.b16 %v506
        %v522 = vpack.c.b16 %v519, %v518
        %v523 = vpack.c.b16 %v521, %v520
        %vm526 = vcmask 261120
        %v528 = vsel %vm526, %v499, 0
        %v531 = vsel %vm526, %v500, 0
        %v534 = vsel %vm526, %v501, 0
        %v537 = vsel %vm526, %v502, 0
        %539 = vmatprep.subr.bf16.mxu0 0
        %540 = vmatpush1.bf16.msra.mxu0 0
        %541 = vmatprep.subr.bf16.mxu0 0
        %542 = vmatpush1.bf16.msra.mxu0 0
        %543 = vmatprep.subr.bf16.mxu0 0
        %544 = vmatpush1.bf16.msra.mxu0 0
        %545 = vmatprep.subr.bf16.mxu0 0
        %546 = vmatpush1.bf16.msra.mxu0 0
        %547 = vmatprep.subr.bf16.mxu0 0
        %548 = vmatpush1.bf16.msra.mxu0 0
        %549 = vmatprep.subr.bf16.mxu0 0
        %550 = vmatpush1.bf16.msra.mxu0 0
        %551 = vmatprep.subr.bf16.mxu0 0
        %552 = vmatpush1.bf16.msra.mxu0 %v523
        %553 = vmatprep.subr.bf16.mxu0 0
        %554 = vmatpush1.bf16.msra.mxu0 %v522
        %555 = vmatprep.subr.bf16.mxu0 0
        %556 = vmatpush2.bf16.msra.mxu0 0
        %557 = vmatprep.subr.bf16.mxu0 0
        %558 = vmatpush2.bf16.msra.mxu0 0
        %559 = vmatprep.subr.bf16.mxu0 0
        %560 = vmatpush2.bf16.msra.mxu0 0
        %561 = vmatprep.subr.bf16.mxu0 0
        %562 = vmatpush2.bf16.msra.mxu0 0
        %563 = vmatprep.subr.bf16.mxu0 0
        %564 = vmatpush2.bf16.msra.mxu0 0
        %565 = vmatprep.subr.bf16.mxu0 0
        %566 = vmatpush2.bf16.msra.mxu0 0
        %567 = vmatprep.subr.bf16.mxu0 0
        %568 = vmatpush2.bf16.msra.mxu0 0
        %569 = vmatprep.subr.bf16.mxu0 0
        %570 = vmatpush2.bf16.msra.mxu0 0
        %571 = vmatprep.mubr.bf16.mxu0 0
        %572 = vmatmul.mubr.bf16.gmra.mxu0 %v528
        %v573 = vpop.f32.mrf.mxu0
        %v574 = vadd.f32 %v512, %v573
        %v575 = vpop.f32.mrf.mxu0
        %v576 = vpop.f32.mrf.mxu0
        %v577 = vadd.f32 %v512, %v576
        %v578 = vpop.f32.mrf.mxu0
        %579 = vmatprep.mubr.bf16.mxu0 0
        %580 = vmatmul.mubr.bf16.gmra.mxu0 %v531
        %v581 = vpop.f32.mrf.mxu0
        %v582 = vadd.f32 %v512, %v581
        %v583 = vpop.f32.mrf.mxu0
        %v584 = vpop.f32.mrf.mxu0
        %v585 = vadd.f32 %v512, %v584
        %v586 = vpop.f32.mrf.mxu0
        %587 = vmatprep.mubr.bf16.mxu0 0
        %588 = vmatmul.mubr.bf16.gmra.mxu0 %v534
        %v589 = vpop.f32.mrf.mxu0
        %v590 = vadd.f32 %v512, %v589
        %v591 = vpop.f32.mrf.mxu0
        %v592 = vpop.f32.mrf.mxu0
        %v593 = vadd.f32 %v512, %v592
        %v594 = vpop.f32.mrf.mxu0
        %595 = vmatprep.mubr.bf16.mxu0 0
        %596 = vmatmul.mubr.bf16.gmra.mxu0 %v537
        %v597 = vpop.f32.mrf.mxu0
        %v598 = vadd.f32 %v512, %v597
        %v599 = vpop.f32.mrf.mxu0
        %v600 = vpop.f32.mrf.mxu0
        %v601 = vadd.f32 %v512, %v600
        %v602 = vpop.f32.mrf.mxu0
        %603 = vdwg.mxu0
        %v604 = vpack.c.bf16 %v577, %v574
        %v605 = vpack.c.bf16 %v585, %v582
        %v606 = vpack.c.bf16 %v593, %v590
        %v607 = vpack.c.bf16 %v601, %v598
        %v608 = vld [vmem:[%s6] sm:$0xf]
        %v609 = vld [vmem:[%s6 + $0x4] sm:$0xf]
        %v610 = vld [vmem:[%s6 + $0x8] sm:$0xf]
        %v611 = vld [vmem:[%s6 + $0xc] sm:$0xf]
        %v616 = vunpack.c.l.b16 %v608
        %v617 = vunpack.c.l.b16 %v609
        %v618 = vunpack.c.l.b16 %v610
        %v619 = vunpack.c.l.b16 %v611
        %v620 = vpack.c.b16 %v617, %v616
        %v621 = vpack.c.b16 %v619, %v618
        %v625 = vsel %vm526, %v604, 0
        %v628 = vsel %vm526, %v605, 0
        %v631 = vsel %vm526, %v606, 0
        %v634 = vsel %vm526, %v607, 0
        %636 = vmatprep.subr.bf16.mxu0 0
        %637 = vmatpush1.bf16.msra.mxu0 0
        %638 = vmatprep.subr.bf16.mxu0 0
        %639 = vmatpush1.bf16.msra.mxu0 0
        %640 = vmatprep.subr.bf16.mxu0 0
        %641 = vmatpush1.bf16.msra.mxu0 0
        %642 = vmatprep.subr.bf16.mxu0 0
        %643 = vmatpush1.bf16.msra.mxu0 0
        %644 = vmatprep.subr.bf16.mxu0 0
        %645 = vmatpush1.bf16.msra.mxu0 0
        %646 = vmatprep.subr.bf16.mxu0 0
        %647 = vmatpush1.bf16.msra.mxu0 0
        %648 = vmatprep.subr.bf16.mxu0 0
        %649 = vmatpush1.bf16.msra.mxu0 %v621
        %650 = vmatprep.subr.bf16.mxu0 0
        %651 = vmatpush1.bf16.msra.mxu0 %v620
        %652 = vmatprep.subr.bf16.mxu0 0
        %653 = vmatpush2.bf16.msra.mxu0 0
        %654 = vmatprep.subr.bf16.mxu0 0
        %655 = vmatpush2.bf16.msra.mxu0 0
        %656 = vmatprep.subr.bf16.mxu0 0
        %657 = vmatpush2.bf16.msra.mxu0 0
        %658 = vmatprep.subr.bf16.mxu0 0
        %659 = vmatpush2.bf16.msra.mxu0 0
        %660 = vmatprep.subr.bf16.mxu0 0
        %661 = vmatpush2.bf16.msra.mxu0 0
        %662 = vmatprep.subr.bf16.mxu0 0
        %663 = vmatpush2.bf16.msra.mxu0 0
        %664 = vmatprep.subr.bf16.mxu0 0
        %665 = vmatpush2.bf16.msra.mxu0 0
        %666 = vmatprep.subr.bf16.mxu0 0
        %667 = vmatpush2.bf16.msra.mxu0 0
        %668 = vmatprep.mubr.bf16.mxu0 0
        %669 = vmatmul.mubr.bf16.gmra.mxu0 %v625
        %v670 = vpop.f32.mrf.mxu0
        %v671 = vadd.f32 0.0, %v670
        %v672 = vpop.f32.mrf.mxu0
        %v673 = vpop.f32.mrf.mxu0
        %v674 = vadd.f32 0.0, %v673
        %v675 = vpop.f32.mrf.mxu0
        %676 = vmatprep.mubr.bf16.mxu0 0
        %677 = vmatmul.mubr.bf16.gmra.mxu0 %v628
        %v678 = vpop.f32.mrf.mxu0
        %v679 = vadd.f32 0.0, %v678
        %v680 = vpop.f32.mrf.mxu0
        %v681 = vpop.f32.mrf.mxu0
        %v682 = vadd.f32 0.0, %v681
        %v683 = vpop.f32.mrf.mxu0
        %684 = vmatprep.mubr.bf16.mxu0 0
        %685 = vmatmul.mubr.bf16.gmra.mxu0 %v631
        %v686 = vpop.f32.mrf.mxu0
        %v687 = vadd.f32 0.0, %v686
        %v688 = vpop.f32.mrf.mxu0
        %v689 = vpop.f32.mrf.mxu0
        %v690 = vadd.f32 0.0, %v689
        %v691 = vpop.f32.mrf.mxu0
        %692 = vmatprep.mubr.bf16.mxu0 0
        %693 = vmatmul.mubr.bf16.gmra.mxu0 %v634
        %v694 = vpop.f32.mrf.mxu0
        %v695 = vadd.f32 0.0, %v694
        %v696 = vpop.f32.mrf.mxu0
        %v697 = vpop.f32.mrf.mxu0
        %v698 = vadd.f32 0.0, %v697
        %v699 = vpop.f32.mrf.mxu0
        %700 = vdwg.mxu0
        %v701 = vld [vmem:[%s387] sm:$0xff]
        %v702 = vlaneseq
        %v703 = vand.u32 %v702, 127
        %704 = vset.pattern.permute.xlu0 0
        %705 = vperm.xlu0 %704, %v701
        %v706 = vpop.permute.xlu0 %705
        %vm707 = vcmp.lt.s32.totalorder %v703, %v706
        %v708 = vmul.f32 %v671, 0.0
        %v709 = vmul.f32 %v674, 0.0
        %v710 = vmul.f32 %v679, 0.0
        %v711 = vmul.f32 %v682, 0.0
        %v712 = vmul.f32 %v687, 0.0
        %v713 = vmul.f32 %v690, 0.0
        %v714 = vmul.f32 %v695, 0.0
        %v715 = vmul.f32 %v698, 0.0
        %vm716 = vcmask 130048
        %v717 = vsel %vm716, %v708, 0.0
        %718 = vadd.xlane.f32.xlu0 %v717
        %v719 = vpop.xlane.xlu0 %718
        %v720 = vsel %vm716, %v709, 0.0
        %721 = vadd.xlane.f32.xlu0 %v720
        %v722 = vpop.xlane.xlu0 %721
        %v723 = vsel %vm716, %v710, 0.0
        %724 = vadd.xlane.f32.xlu0 %v723
        %v725 = vpop.xlane.xlu0 %724
        %v726 = vsel %vm716, %v711, 0.0
        %727 = vadd.xlane.f32.xlu0 %v726
        %v728 = vpop.xlane.xlu0 %727
        %v729 = vsel %vm716, %v712, 0.0
        %730 = vadd.xlane.f32.xlu0 %v729
        %v731 = vpop.xlane.xlu0 %730
        %v732 = vsel %vm716, %v713, 0.0
        %733 = vadd.xlane.f32.xlu0 %v732
        %v734 = vpop.xlane.xlu0 %733
        %v735 = vsel %vm716, %v714, 0.0
        %736 = vadd.xlane.f32.xlu0 %v735
        %v737 = vpop.xlane.xlu0 %736
        %v738 = vsel %vm716, %v715, 0.0
        %739 = vadd.xlane.f32.xlu0 %v738
        %v740 = vpop.xlane.xlu0 %739
        %v749 = vlaneseq
        %v750 = vshrl.u32 %v749, 7
        %v751 = vsub.s32 %v703, %v750
        %v752 = vrot.slane %v719, %v751
        %v753 = vlaneseq
        %v754 = vshrl.u32 %v753, 7
        %v755 = vsub.s32 %v703, %v754
        %v756 = vrot.slane %v722, %v755
        %v757 = vlaneseq
        %v758 = vshrl.u32 %v757, 7
        %v759 = vsub.s32 %v703, %v758
        %v760 = vrot.slane %v725, %v759
        %v761 = vlaneseq
        %v762 = vshrl.u32 %v761, 7
        %v763 = vsub.s32 %v703, %v762
        %v764 = vrot.slane %v728, %v763
        %v765 = vlaneseq
        %v766 = vshrl.u32 %v765, 7
        %v767 = vsub.s32 %v703, %v766
        %v768 = vrot.slane %v731, %v767
        %v769 = vlaneseq
        %v770 = vshrl.u32 %v769, 7
        %v771 = vsub.s32 %v703, %v770
        %v772 = vrot.slane %v734, %v771
        %v773 = vlaneseq
        %v774 = vshrl.u32 %v773, 7
        %v775 = vsub.s32 %v703, %v774
        %v776 = vrot.slane %v737, %v775
        %v777 = vlaneseq
        %v778 = vshrl.u32 %v777, 7
        %v779 = vsub.s32 %v703, %v778
        %v780 = vrot.slane %v740, %v779
        %vm781 = vcmask 1041409
        %v782 = vsel %vm781, %v756, %v752
        %vm783 = vcmask 1042434
        %v784 = vsel %vm783, %v760, %v782
        %vm785 = vcmask 1043459
        %v786 = vsel %vm785, %v764, %v784
        %vm787 = vcmask 1044484
        %v788 = vsel %vm787, %v768, %v786
        %vm789 = vcmask 1045509
        %v790 = vsel %vm789, %v772, %v788
        %vm791 = vcmask 1046534
        %v792 = vsel %vm791, %v776, %v790
        %vm793 = vcmask 1047559
        %v794 = vsel %vm793, %v780, %v792
        %v796 = vsel %vm707, %v794, -1e+30
        %v797 = vsel %vm409, %v796, -inf
        %798 = vmax.xlane.f32.xlu0 %v797
        %v799 = vpop.xlane.xlu0 %798
        %v800 = vsub.f32 %v796, %v799
        %v801 = vmul.f32 %v800, 1.442695
        %v802 = vpow.pop %v801
        %v803 = vsel %vm707, %v802, 0.0
        %v804 = vsel %vm409, %v803, 0.0
        %805 = vadd.xlane.f32.xlu0 %v804
        %v806 = vpop.xlane.xlu0 %805
        %v807 = vmax.f32 %v806, 1e-30
        %v808 = vrcp.pop %v807
        %v809 = vmul.f32 %v803, %v808
        %v810 = vlaneseq
        %v811 = vshrl.u32 %v810, 7
        %v812 = vsub.s32 0, %v811
        %v813 = vrot.slane %v809, %v812
        %815 = vbcast.lane.b32.xlu0 %v813, 256
        %v816 = vpop.permute.xlu0 %815
        %v817 = vlaneseq
        %v818 = vshrl.u32 %v817, 7
        %v819 = vsub.s32 1, %v818
        %v820 = vrot.slane %v809, %v819
        %822 = vbcast.lane.b32.xlu0 %v820, 256
        %v823 = vpop.permute.xlu0 %822
        %v824 = vlaneseq
        %v825 = vshrl.u32 %v824, 7
        %v826 = vsub.s32 2, %v825
        %v827 = vrot.slane %v809, %v826
        %829 = vbcast.lane.b32.xlu0 %v827, 256
        %v830 = vpop.permute.xlu0 %829
        %v831 = vlaneseq
        %v832 = vshrl.u32 %v831, 7
        %v833 = vsub.s32 3, %v832
        %v834 = vrot.slane %v809, %v833
        %836 = vbcast.lane.b32.xlu0 %v834, 256
        %v837 = vpop.permute.xlu0 %836
        %v838 = vlaneseq
        %v839 = vshrl.u32 %v838, 7
        %v840 = vsub.s32 4, %v839
        %v841 = vrot.slane %v809, %v840
        %843 = vbcast.lane.b32.xlu0 %v841, 256
        %v844 = vpop.permute.xlu0 %843
        %v845 = vlaneseq
        %v846 = vshrl.u32 %v845, 7
        %v847 = vsub.s32 5, %v846
        %v848 = vrot.slane %v809, %v847
        %850 = vbcast.lane.b32.xlu0 %v848, 256
        %v851 = vpop.permute.xlu0 %850
        %v852 = vlaneseq
        %v853 = vshrl.u32 %v852, 7
        %v854 = vsub.s32 6, %v853
        %v855 = vrot.slane %v809, %v854
        %857 = vbcast.lane.b32.xlu0 %v855, 256
        %v858 = vpop.permute.xlu0 %857
        %v859 = vlaneseq
        %v860 = vshrl.u32 %v859, 7
        %v861 = vsub.s32 7, %v860
        %v862 = vrot.slane %v809, %v861
        %864 = vbcast.lane.b32.xlu0 %v862, 256
        %v865 = vpop.permute.xlu0 %864
        %v866 = vmul.f32 %v816, %v574
        %v867 = vmul.f32 %v823, %v577
        %v868 = vmul.f32 %v830, %v582
        %v869 = vmul.f32 %v837, %v585
        %v870 = vmul.f32 %v844, %v590
        %v871 = vmul.f32 %v851, %v593
        %v872 = vmul.f32 %v858, %v598
        %v873 = vmul.f32 %v865, %v601
        %v874 = vsel %vm526, %v866, 0.0
        %v875 = vrot.slane %v874, 4
        %v876 = vadd.f32 %v874, %v875
        %v877 = vrot.slane %v876, 2
        %v878 = vadd.f32 %v876, %v877
        %v879 = vrot.slane %v878, 1
        %v880 = vadd.f32 %v878, %v879
        %v881 = vsel %vm526, %v867, 0.0
        %v882 = vrot.slane %v881, 4
        %v883 = vadd.f32 %v881, %v882
        %v884 = vrot.slane %v883, 2
        %v885 = vadd.f32 %v883, %v884
        %v886 = vrot.slane %v885, 1
        %v887 = vadd.f32 %v885, %v886
        %v888 = vsel %vm526, %v868, 0.0
        %v889 = vrot.slane %v888, 4
        %v890 = vadd.f32 %v888, %v889
        %v891 = vrot.slane %v890, 2
        %v892 = vadd.f32 %v890, %v891
        %v893 = vrot.slane %v892, 1
        %v894 = vadd.f32 %v892, %v893
        %v895 = vsel %vm526, %v869, 0.0
        %v896 = vrot.slane %v895, 4
        %v897 = vadd.f32 %v895, %v896
        %v898 = vrot.slane %v897, 2
        %v899 = vadd.f32 %v897, %v898
        %v900 = vrot.slane %v899, 1
        %v901 = vadd.f32 %v899, %v900
        %v902 = vsel %vm526, %v870, 0.0
        %v903 = vrot.slane %v902, 4
        %v904 = vadd.f32 %v902, %v903
        %v905 = vrot.slane %v904, 2
        %v906 = vadd.f32 %v904, %v905
        %v907 = vrot.slane %v906, 1
        %v908 = vadd.f32 %v906, %v907
        %v909 = vsel %vm526, %v871, 0.0
        %v910 = vrot.slane %v909, 4
        %v911 = vadd.f32 %v909, %v910
        %v912 = vrot.slane %v911, 2
        %v913 = vadd.f32 %v911, %v912
        %v914 = vrot.slane %v913, 1
        %v915 = vadd.f32 %v913, %v914
        %v916 = vsel %vm526, %v872, 0.0
        %v917 = vrot.slane %v916, 4
        %v918 = vadd.f32 %v916, %v917
        %v919 = vrot.slane %v918, 2
        %v920 = vadd.f32 %v918, %v919
        %v921 = vrot.slane %v920, 1
        %v922 = vadd.f32 %v920, %v921
        %v923 = vsel %vm526, %v873, 0.0
        %v924 = vrot.slane %v923, 4
        %v925 = vadd.f32 %v923, %v924
        %v926 = vrot.slane %v925, 2
        %v927 = vadd.f32 %v925, %v926
        %v928 = vrot.slane %v927, 1
        %v929 = vadd.f32 %v927, %v928
        %v938 = vsel %vm781, %v887, %v880
        %v939 = vsel %vm783, %v894, %v938
        %v940 = vsel %vm785, %v901, %v939
        %v941 = vsel %vm787, %v908, %v940
        %v942 = vsel %vm789, %v915, %v941
        %v943 = vsel %vm791, %v922, %v942
        %v944 = vsel %vm793, %v929, %v943
        %v946 = vsel %vm526, %v944, 0.0
        %v947 = vpack.c.bf16 %v946, %v946
        %v948 = vld [vmem:[%s7] sm:$0xf]
        %v949 = vld [vmem:[%s7 + $0x4] sm:$0xf]
        %v950 = vld [vmem:[%s7 + $0x8] sm:$0xf]
        %v951 = vld [vmem:[%s7 + $0xc] sm:$0xf]
        %v952 = vld [vmem:[%s7 + $0x10] sm:$0xf]
        %v953 = vld [vmem:[%s7 + $0x14] sm:$0xf]
        %v954 = vld [vmem:[%s8] sm:$0x1]
        %v956 = vlaneseq
        %v957 = vshrl.u32 %v956, 7
        %v958 = vsub.s32 0, %v957
        %v959 = vrot.slane %v954, %v958
        %v967 = vunpack.c.l.b16 %v948
        %v968 = vunpack.c.l.b16 %v949
        %v969 = vunpack.c.l.b16 %v950
        %v970 = vunpack.c.l.b16 %v951
        %v971 = vunpack.c.l.b16 %v952
        %v972 = vunpack.c.l.b16 %v953
        %v973 = vpack.c.b16 %v968, %v967
        %v974 = vpack.c.b16 %v970, %v969
        %v975 = vpack.c.b16 %v972, %v971
        %vm979 = vcmask 392192
        %v981 = vsel %vm979, %v947, 0
        %983 = vmatprep.subr.bf16.mxu0 0
        %984 = vmatpush1.bf16.msra.mxu0 0
        %985 = vmatprep.subr.bf16.mxu0 0
        %986 = vmatpush1.bf16.msra.mxu0 0
        %987 = vmatprep.subr.bf16.mxu0 0
        %988 = vmatpush1.bf16.msra.mxu0 0
        %989 = vmatprep.subr.bf16.mxu0 0
        %990 = vmatpush1.bf16.msra.mxu0 0
        %991 = vmatprep.subr.bf16.mxu0 0
        %992 = vmatpush1.bf16.msra.mxu0 0
        %993 = vmatprep.subr.bf16.mxu0 0
        %994 = vmatpush1.bf16.msra.mxu0 %v975
        %995 = vmatprep.subr.bf16.mxu0 0
        %996 = vmatpush1.bf16.msra.mxu0 %v974
        %997 = vmatprep.subr.bf16.mxu0 0
        %998 = vmatpush1.bf16.msra.mxu0 %v973
        %999 = vmatprep.subr.bf16.mxu0 0
        %1000 = vmatpush2.bf16.msra.mxu0 0
        %1001 = vmatprep.subr.bf16.mxu0 0
        %1002 = vmatpush2.bf16.msra.mxu0 0
        %1003 = vmatprep.subr.bf16.mxu0 0
        %1004 = vmatpush2.bf16.msra.mxu0 0
        %1005 = vmatprep.subr.bf16.mxu0 0
        %1006 = vmatpush2.bf16.msra.mxu0 0
        %1007 = vmatprep.subr.bf16.mxu0 0
        %1008 = vmatpush2.bf16.msra.mxu0 0
        %1009 = vmatprep.subr.bf16.mxu0 0
        %1010 = vmatpush2.bf16.msra.mxu0 0
        %1011 = vmatprep.subr.bf16.mxu0 0
        %1012 = vmatpush2.bf16.msra.mxu0 0
        %1013 = vmatprep.subr.bf16.mxu0 0
        %1014 = vmatpush2.bf16.msra.mxu0 0
        %1015 = vmatprep.mubr.bf16.mxu0 0
        %1016 = vmatmul.mubr.bf16.gmra.mxu0 %v981
        %v1017 = vpop.f32.mrf.mxu0
        %v1018 = vadd.f32 %v959, %v1017
        %v1019 = vpop.f32.mrf.mxu0
        %v1020 = vpop.f32.mrf.mxu0
        %v1021 = vpop.f32.mrf.mxu0
        %1022 = vdwg.mxu0
        %v1023 = vxor.u32 %v1018, 2147483648
        %v1024 = vmul.f32 %v1023, 1.442695
        %v1025 = vpow.pop %v1024
        %v1026 = vadd.f32 %v1025, 1.0
        %v1027 = vrcp.pop %v1026
        %v1028 = vmul.f32 1.0, %v1027
        %v1029 = vtanh.pop %v1018
        %v1030 = vmul.f32 %v1028, 0.0
        %1032 = vrot.lane.b32.xlu0 %v1029, 96
        %v1033 = vpop.permute.xlu0 %1032
        %v1035 = vmul.f32 %v1028, %v1033
        %1037 = vrot.lane.b32.xlu0 %v1035, 16
        %v1038 = vpop.permute.xlu0 %1037
        %v1040 = vadd.f32 %v1030, %v1038
        %v1041 = vtanh.pop %v1040
        %1043 = vrot.lane.b32.xlu0 %v1041, 32
        %v1044 = vpop.permute.xlu0 %1043
        %v1046 = vmul.f32 %v1028, %v1044
        %v1048 = vcombine.high %v1046, %v1046
        %v1050 = vunpack.c.l.s4 1966171168
        %v1051 = vunpack.c.0.s8 %v1050
        %v1052 = vlaneseq
        %v1053 = vshrl.u32 %v1052, 7
        %v1054 = vsub.s32 %v1051, %v1053
        %v1055 = vrot.slane %v1046, %v1054
        %v1057 = vunpack.c.l.s4 1966171168
        %v1058 = vunpack.c.0.s8 %v1057
        %v1059 = vlaneseq
        %v1060 = vshrl.u32 %v1059, 7
        %v1061 = vsub.s32 %v1058, %v1060
        %v1062 = vrot.slane %v1048, %v1061
        %v1063 = vcombine.high %v1055, %v1055
        %v1064 = vcombine.high %v1062, %v1062
        %v1066 = vunpack.c.l.s4 1966171168
        %v1067 = vunpack.c.0.s8 %v1066
        %v1068 = vlaneseq
        %v1069 = vshrl.u32 %v1068, 7
        %v1070 = vsub.s32 %v1067, %v1069
        %v1071 = vrot.slane %v1055, %v1070
        %v1073 = vunpack.c.l.s4 1966171168
        %v1074 = vunpack.c.0.s8 %v1073
        %v1075 = vlaneseq
        %v1076 = vshrl.u32 %v1075, 7
        %v1077 = vsub.s32 %v1074, %v1076
        %v1078 = vrot.slane %v1062, %v1077
        %v1080 = vunpack.c.l.s4 1966171168
        %v1081 = vunpack.c.0.s8 %v1080
        %v1082 = vlaneseq
        %v1083 = vshrl.u32 %v1082, 7
        %v1084 = vsub.s32 %v1081, %v1083
        %v1085 = vrot.slane %v1063, %v1084
        %v1087 = vunpack.c.l.s4 1966171168
        %v1088 = vunpack.c.0.s8 %v1087
        %v1089 = vlaneseq
        %v1090 = vshrl.u32 %v1089, 7
        %v1091 = vsub.s32 %v1088, %v1090
        %v1092 = vrot.slane %v1064, %v1091
        %v1093 = vcombine.high %v1071, %v1071
        %v1094 = vcombine.high %v1078, %v1078
        %v1095 = vcombine.high %v1085, %v1085
        %v1096 = vcombine.high %v1092, %v1092
        %v1097 = vlaneseq
        %v1098 = vshrl.u32 %v1097, 7
        %v1099 = vsub.s32 0, %v1098
        %v1100 = vrot.slane %v1071, %v1099
        %v1101 = vlaneseq
        %v1102 = vshrl.u32 %v1101, 7
        %v1103 = vsub.s32 0, %v1102
        %v1104 = vrot.slane %v1085, %v1103
        %v1105 = vlaneseq
        %v1106 = vshrl.u32 %v1105, 7
        %v1107 = vsub.s32 0, %v1106
        %v1108 = vrot.slane %v1093, %v1107
        %v1109 = vlaneseq
        %v1110 = vshrl.u32 %v1109, 7
        %v1111 = vsub.s32 0, %v1110
        %v1112 = vrot.slane %v1095, %v1111
        %v1113 = vlaneseq
        %v1114 = vshrl.u32 %v1113, 7
        %v1115 = vsub.s32 0, %v1114
        %v1116 = vrot.slane %v1078, %v1115
        %v1117 = vlaneseq
        %v1118 = vshrl.u32 %v1117, 7
        %v1119 = vsub.s32 0, %v1118
        %v1120 = vrot.slane %v1092, %v1119
        %v1121 = vlaneseq
        %v1122 = vshrl.u32 %v1121, 7
        %v1123 = vsub.s32 0, %v1122
        %v1124 = vrot.slane %v1094, %v1123
        %v1125 = vlaneseq
        %v1126 = vshrl.u32 %v1125, 7
        %v1127 = vsub.s32 0, %v1126
        %v1128 = vrot.slane %v1096, %v1127
        %1129 = vrot.lane.b32.xlu0 %v1100, 80
        %v1130 = vpop.permute.xlu0 %1129
        %1131 = vrot.lane.b32.xlu0 %v1104, 80
        %v1132 = vpop.permute.xlu0 %1131
        %1133 = vrot.lane.b32.xlu0 %v1108, 80
        %v1134 = vpop.permute.xlu0 %1133
        %1135 = vrot.lane.b32.xlu0 %v1112, 80
        %v1136 = vpop.permute.xlu0 %1135
        %1137 = vrot.lane.b32.xlu0 %v1116, 80
        %v1138 = vpop.permute.xlu0 %1137
        %1139 = vrot.lane.b32.xlu0 %v1120, 80
        %v1140 = vpop.permute.xlu0 %1139
        %1141 = vrot.lane.b32.xlu0 %v1124, 80
        %v1142 = vpop.permute.xlu0 %1141
        %1143 = vrot.lane.b32.xlu0 %v1128, 80
        %v1144 = vpop.permute.xlu0 %1143
        %v1153 = vmul.f32 %v671, %v1130
        %v1154 = vmul.f32 %v674, %v1132
        %v1155 = vmul.f32 %v679, %v1134
        %v1156 = vmul.f32 %v682, %v1136
        %v1157 = vmul.f32 %v687, %v1138
        %v1158 = vmul.f32 %v690, %v1140
        %v1159 = vmul.f32 %v695, %v1142
        %v1160 = vmul.f32 %v698, %v1144
        %v1161 = vsel %vm716, %v1153, 0.0
        %1162 = vadd.xlane.f32.xlu0 %v1161
        %v1163 = vpop.xlane.xlu0 %1162
        %v1164 = vsel %vm716, %v1154, 0.0
        %1165 = vadd.xlane.f32.xlu0 %v1164
        %v1166 = vpop.xlane.xlu0 %1165
        %v1167 = vsel %vm716, %v1155, 0.0
        %1168 = vadd.xlane.f32.xlu0 %v1167
        %v1169 = vpop.xlane.xlu0 %1168
        %v1170 = vsel %vm716, %v1156, 0.0
        %1171 = vadd.xlane.f32.xlu0 %v1170
        %v1172 = vpop.xlane.xlu0 %1171
        %v1173 = vsel %vm716, %v1157, 0.0
        %1174 = vadd.xlane.f32.xlu0 %v1173
        %v1175 = vpop.xlane.xlu0 %1174
        %v1176 = vsel %vm716, %v1158, 0.0
        %1177 = vadd.xlane.f32.xlu0 %v1176
        %v1178 = vpop.xlane.xlu0 %1177
        %v1179 = vsel %vm716, %v1159, 0.0
        %1180 = vadd.xlane.f32.xlu0 %v1179
        %v1181 = vpop.xlane.xlu0 %1180
        %v1182 = vsel %vm716, %v1160, 0.0
        %1183 = vadd.xlane.f32.xlu0 %v1182
        %v1184 = vpop.xlane.xlu0 %1183
        %v1193 = vlaneseq
        %v1194 = vshrl.u32 %v1193, 7
        %v1195 = vsub.s32 %v703, %v1194
        %v1196 = vrot.slane %v1163, %v1195
        %v1197 = vlaneseq
        %v1198 = vshrl.u32 %v1197, 7
        %v1199 = vsub.s32 %v703, %v1198
        %v1200 = vrot.slane %v1166, %v1199
        %v1201 = vlaneseq
        %v1202 = vshrl.u32 %v1201, 7
        %v1203 = vsub.s32 %v703, %v1202
        %v1204 = vrot.slane %v1169, %v1203
        %v1205 = vlaneseq
        %v1206 = vshrl.u32 %v1205, 7
        %v1207 = vsub.s32 %v703, %v1206
        %v1208 = vrot.slane %v1172, %v1207
        %v1209 = vlaneseq
        %v1210 = vshrl.u32 %v1209, 7
        %v1211 = vsub.s32 %v703, %v1210
        %v1212 = vrot.slane %v1175, %v1211
        %v1213 = vlaneseq
        %v1214 = vshrl.u32 %v1213, 7
        %v1215 = vsub.s32 %v703, %v1214
        %v1216 = vrot.slane %v1178, %v1215
        %v1217 = vlaneseq
        %v1218 = vshrl.u32 %v1217, 7
        %v1219 = vsub.s32 %v703, %v1218
        %v1220 = vrot.slane %v1181, %v1219
        %v1221 = vlaneseq
        %v1222 = vshrl.u32 %v1221, 7
        %v1223 = vsub.s32 %v703, %v1222
        %v1224 = vrot.slane %v1184, %v1223
        %v1225 = vsel %vm781, %v1200, %v1196
        %v1226 = vsel %vm783, %v1204, %v1225
        %v1227 = vsel %vm785, %v1208, %v1226
        %v1228 = vsel %vm787, %v1212, %v1227
        %v1229 = vsel %vm789, %v1216, %v1228
        %v1230 = vsel %vm791, %v1220, %v1229
        %v1231 = vsel %vm793, %v1224, %v1230
        %v1233 = vsel %vm707, %v1231, -1e+30
        %v1234 = vsel %vm409, %v1233, -inf
        %1235 = vmax.xlane.f32.xlu0 %v1234
        %v1236 = vpop.xlane.xlu0 %1235
        %v1237 = vsub.f32 %v1233, %v1236
        %v1238 = vmul.f32 %v1237, 1.442695
        %v1239 = vpow.pop %v1238
        %v1240 = vsel %vm707, %v1239, 0.0
        %v1241 = vsel %vm409, %v1240, 0.0
        %1242 = vadd.xlane.f32.xlu0 %v1241
        %v1243 = vpop.xlane.xlu0 %1242
        %v1244 = vmax.f32 %v1243, 1e-30
        %v1245 = vrcp.pop %v1244
        %v1246 = vmul.f32 %v1240, %v1245
        %v1247 = vlaneseq
        %v1248 = vshrl.u32 %v1247, 7
        %v1249 = vsub.s32 0, %v1248
        %v1250 = vrot.slane %v1246, %v1249
        %1252 = vbcast.lane.b32.xlu0 %v1250, 256
        %v1253 = vpop.permute.xlu0 %1252
        %v1254 = vlaneseq
        %v1255 = vshrl.u32 %v1254, 7
        %v1256 = vsub.s32 1, %v1255
        %v1257 = vrot.slane %v1246, %v1256
        %1259 = vbcast.lane.b32.xlu0 %v1257, 256
        %v1260 = vpop.permute.xlu0 %1259
        %v1261 = vlaneseq
        %v1262 = vshrl.u32 %v1261, 7
        %v1263 = vsub.s32 2, %v1262
        %v1264 = vrot.slane %v1246, %v1263
        %1266 = vbcast.lane.b32.xlu0 %v1264, 256
        %v1267 = vpop.permute.xlu0 %1266
        %v1268 = vlaneseq
        %v1269 = vshrl.u32 %v1268, 7
        %v1270 = vsub.s32 3, %v1269
        %v1271 = vrot.slane %v1246, %v1270
        %1273 = vbcast.lane.b32.xlu0 %v1271, 256
        %v1274 = vpop.permute.xlu0 %1273
        %v1275 = vlaneseq
        %v1276 = vshrl.u32 %v1275, 7
        %v1277 = vsub.s32 4, %v1276
        %v1278 = vrot.slane %v1246, %v1277
        %1280 = vbcast.lane.b32.xlu0 %v1278, 256
        %v1281 = vpop.permute.xlu0 %1280
        %v1282 = vlaneseq
        %v1283 = vshrl.u32 %v1282, 7
        %v1284 = vsub.s32 5, %v1283
        %v1285 = vrot.slane %v1246, %v1284
        %1287 = vbcast.lane.b32.xlu0 %v1285, 256
        %v1288 = vpop.permute.xlu0 %1287
        %v1289 = vlaneseq
        %v1290 = vshrl.u32 %v1289, 7
        %v1291 = vsub.s32 6, %v1290
        %v1292 = vrot.slane %v1246, %v1291
        %1294 = vbcast.lane.b32.xlu0 %v1292, 256
        %v1295 = vpop.permute.xlu0 %1294
        %v1296 = vlaneseq
        %v1297 = vshrl.u32 %v1296, 7
        %v1298 = vsub.s32 7, %v1297
        %v1299 = vrot.slane %v1246, %v1298
        %1301 = vbcast.lane.b32.xlu0 %v1299, 256
        %v1302 = vpop.permute.xlu0 %1301
        %v1303 = vmul.f32 %v1253, %v574
        %v1304 = vmul.f32 %v1260, %v577
        %v1305 = vmul.f32 %v1267, %v582
        %v1306 = vmul.f32 %v1274, %v585
        %v1307 = vmul.f32 %v1281, %v590
        %v1308 = vmul.f32 %v1288, %v593
        %v1309 = vmul.f32 %v1295, %v598
        %v1310 = vmul.f32 %v1302, %v601
        %v1311 = vsel %vm526, %v1303, 0.0
        %v1312 = vrot.slane %v1311, 4
        %v1313 = vadd.f32 %v1311, %v1312
        %v1314 = vrot.slane %v1313, 2
        %v1315 = vadd.f32 %v1313, %v1314
        %v1316 = vrot.slane %v1315, 1
        %v1317 = vadd.f32 %v1315, %v1316
        %v1318 = vsel %vm526, %v1304, 0.0
        %v1319 = vrot.slane %v1318, 4
        %v1320 = vadd.f32 %v1318, %v1319
        %v1321 = vrot.slane %v1320, 2
        %v1322 = vadd.f32 %v1320, %v1321
        %v1323 = vrot.slane %v1322, 1
        %v1324 = vadd.f32 %v1322, %v1323
        %v1325 = vsel %vm526, %v1305, 0.0
        %v1326 = vrot.slane %v1325, 4
        %v1327 = vadd.f32 %v1325, %v1326
        %v1328 = vrot.slane %v1327, 2
        %v1329 = vadd.f32 %v1327, %v1328
        %v1330 = vrot.slane %v1329, 1
        %v1331 = vadd.f32 %v1329, %v1330
        %v1332 = vsel %vm526, %v1306, 0.0
        %v1333 = vrot.slane %v1332, 4
        %v1334 = vadd.f32 %v1332, %v1333
        %v1335 = vrot.slane %v1334, 2
        %v1336 = vadd.f32 %v1334, %v1335
        %v1337 = vrot.slane %v1336, 1
        %v1338 = vadd.f32 %v1336, %v1337
        %v1339 = vsel %vm526, %v1307, 0.0
        %v1340 = vrot.slane %v1339, 4
        %v1341 = vadd.f32 %v1339, %v1340
        %v1342 = vrot.slane %v1341, 2
        %v1343 = vadd.f32 %v1341, %v1342
        %v1344 = vrot.slane %v1343, 1
        %v1345 = vadd.f32 %v1343, %v1344
        %v1346 = vsel %vm526, %v1308, 0.0
        %v1347 = vrot.slane %v1346, 4
        %v1348 = vadd.f32 %v1346, %v1347
        %v1349 = vrot.slane %v1348, 2
        %v1350 = vadd.f32 %v1348, %v1349
        %v1351 = vrot.slane %v1350, 1
        %v1352 = vadd.f32 %v1350, %v1351
        %v1353 = vsel %vm526, %v1309, 0.0
        %v1354 = vrot.slane %v1353, 4
        %v1355 = vadd.f32 %v1353, %v1354
        %v1356 = vrot.slane %v1355, 2
        %v1357 = vadd.f32 %v1355, %v1356
        %v1358 = vrot.slane %v1357, 1
        %v1359 = vadd.f32 %v1357, %v1358
        %v1360 = vsel %vm526, %v1310, 0.0
        %v1361 = vrot.slane %v1360, 4
        %v1362 = vadd.f32 %v1360, %v1361
        %v1363 = vrot.slane %v1362, 2
        %v1364 = vadd.f32 %v1362, %v1363
        %v1365 = vrot.slane %v1364, 1
        %v1366 = vadd.f32 %v1364, %v1365
        %v1375 = vsel %vm781, %v1324, %v1317
        %v1376 = vsel %vm783, %v1331, %v1375
        %v1377 = vsel %vm785, %v1338, %v1376
        %v1378 = vsel %vm787, %v1345, %v1377
        %v1379 = vsel %vm789, %v1352, %v1378
        %v1380 = vsel %vm791, %v1359, %v1379
        %v1381 = vsel %vm793, %v1366, %v1380
        %1383 = vrot.lane.b32.xlu0 %v1046, 112
        %v1384 = vpop.permute.xlu0 %1383
        %v1386 = vsel %vm526, %v1381, %v1384
        %v1387 = vpack.c.bf16 %v1386, %v1386
        %v1389 = vsel %vm979, %v1387, 0
        %1391 = vmatprep.subr.bf16.mxu0 0
        %1392 = vmatpush1.bf16.msra.mxu0 0
        %1393 = vmatprep.subr.bf16.mxu0 0
        %1394 = vmatpush1.bf16.msra.mxu0 0
        %1395 = vmatprep.subr.bf16.mxu0 0
        %1396 = vmatpush1.bf16.msra.mxu0 0
        %1397 = vmatprep.subr.bf16.mxu0 0
        %1398 = vmatpush1.bf16.msra.mxu0 0
        %1399 = vmatprep.subr.bf16.mxu0 0
        %1400 = vmatpush1.bf16.msra.mxu0 0
        %1401 = vmatprep.subr.bf16.mxu0 0
        %1402 = vmatpush1.bf16.msra.mxu0 %v975
        %1403 = vmatprep.subr.bf16.mxu0 0
        %1404 = vmatpush1.bf16.msra.mxu0 %v974
        %1405 = vmatprep.subr.bf16.mxu0 0
        %1406 = vmatpush1.bf16.msra.mxu0 %v973
        %1407 = vmatprep.subr.bf16.mxu0 0
        %1408 = vmatpush2.bf16.msra.mxu0 0
        %1409 = vmatprep.subr.bf16.mxu0 0
        %1410 = vmatpush2.bf16.msra.mxu0 0
        %1411 = vmatprep.subr.bf16.mxu0 0
        %1412 = vmatpush2.bf16.msra.mxu0 0
        %1413 = vmatprep.subr.bf16.mxu0 0
        %1414 = vmatpush2.bf16.msra.mxu0 0
        %1415 = vmatprep.subr.bf16.mxu0 0
        %1416 = vmatpush2.bf16.msra.mxu0 0
        %1417 = vmatprep.subr.bf16.mxu0 0
        %1418 = vmatpush2.bf16.msra.mxu0 0
        %1419 = vmatprep.subr.bf16.mxu0 0
        %1420 = vmatpush2.bf16.msra.mxu0 0
        %1421 = vmatprep.subr.bf16.mxu0 0
        %1422 = vmatpush2.bf16.msra.mxu0 0
        %1423 = vmatprep.mubr.bf16.mxu0 0
        %1424 = vmatmul.mubr.bf16.gmra.mxu0 %v1389
        %v1425 = vpop.f32.mrf.mxu0
        %v1426 = vadd.f32 %v959, %v1425
        %v1427 = vpop.f32.mrf.mxu0
        %v1428 = vpop.f32.mrf.mxu0
        %v1429 = vpop.f32.mrf.mxu0
        %1430 = vdwg.mxu0
        %v1431 = vxor.u32 %v1426, 2147483648
        %v1432 = vmul.f32 %v1431, 1.442695
        %v1433 = vpow.pop %v1432
        %v1434 = vadd.f32 %v1433, 1.0
        %v1435 = vrcp.pop %v1434
        %v1436 = vmul.f32 1.0, %v1435
        %v1437 = vtanh.pop %v1426
        %v1438 = vmul.f32 %v1436, %v1040
        %1440 = vrot.lane.b32.xlu0 %v1437, 96
        %v1441 = vpop.permute.xlu0 %1440
        %v1443 = vmul.f32 %v1436, %v1441
        %1445 = vrot.lane.b32.xlu0 %v1443, 16
        %v1446 = vpop.permute.xlu0 %1445
        %v1448 = vadd.f32 %v1438, %v1446
        %v1449 = vtanh.pop %v1448
        %1451 = vrot.lane.b32.xlu0 %v1449, 32
        %v1452 = vpop.permute.xlu0 %1451
        %v1454 = vmul.f32 %v1436, %v1452
        %v1456 = vcombine.high %v1454, %v1454
        %v1458 = vunpack.c.l.s4 1966171168
        %v1459 = vunpack.c.0.s8 %v1458
        %v1460 = vlaneseq
        %v1461 = vshrl.u32 %v1460, 7
        %v1462 = vsub.s32 %v1459, %v1461
        %v1463 = vrot.slane %v1454, %v1462
        %v1465 = vunpack.c.l.s4 1966171168
        %v1466 = vunpack.c.0.s8 %v1465
        %v1467 = vlaneseq
        %v1468 = vshrl.u32 %v1467, 7
        %v1469 = vsub.s32 %v1466, %v1468
        %v1470 = vrot.slane %v1456, %v1469
        %v1471 = vcombine.high %v1463, %v1463
        %v1472 = vcombine.high %v1470, %v1470
        %v1474 = vunpack.c.l.s4 1966171168
        %v1475 = vunpack.c.0.s8 %v1474
        %v1476 = vlaneseq
        %v1477 = vshrl.u32 %v1476, 7
        %v1478 = vsub.s32 %v1475, %v1477
        %v1479 = vrot.slane %v1463, %v1478
        %v1481 = vunpack.c.l.s4 1966171168
        %v1482 = vunpack.c.0.s8 %v1481
        %v1483 = vlaneseq
        %v1484 = vshrl.u32 %v1483, 7
        %v1485 = vsub.s32 %v1482, %v1484
        %v1486 = vrot.slane %v1470, %v1485
        %v1488 = vunpack.c.l.s4 1966171168
        %v1489 = vunpack.c.0.s8 %v1488
        %v1490 = vlaneseq
        %v1491 = vshrl.u32 %v1490, 7
        %v1492 = vsub.s32 %v1489, %v1491
        %v1493 = vrot.slane %v1471, %v1492
        %v1495 = vunpack.c.l.s4 1966171168
        %v1496 = vunpack.c.0.s8 %v1495
        %v1497 = vlaneseq
        %v1498 = vshrl.u32 %v1497, 7
        %v1499 = vsub.s32 %v1496, %v1498
        %v1500 = vrot.slane %v1472, %v1499
        %v1501 = vcombine.high %v1479, %v1479
        %v1502 = vcombine.high %v1486, %v1486
        %v1503 = vcombine.high %v1493, %v1493
        %v1504 = vcombine.high %v1500, %v1500
        %v1505 = vlaneseq
        %v1506 = vshrl.u32 %v1505, 7
        %v1507 = vsub.s32 0, %v1506
        %v1508 = vrot.slane %v1479, %v1507
        %v1509 = vlaneseq
        %v1510 = vshrl.u32 %v1509, 7
        %v1511 = vsub.s32 0, %v1510
        %v1512 = vrot.slane %v1493, %v1511
        %v1513 = vlaneseq
        %v1514 = vshrl.u32 %v1513, 7
        %v1515 = vsub.s32 0, %v1514
        %v1516 = vrot.slane %v1501, %v1515
        %v1517 = vlaneseq
        %v1518 = vshrl.u32 %v1517, 7
        %v1519 = vsub.s32 0, %v1518
        %v1520 = vrot.slane %v1503, %v1519
        %v1521 = vlaneseq
        %v1522 = vshrl.u32 %v1521, 7
        %v1523 = vsub.s32 0, %v1522
        %v1524 = vrot.slane %v1486, %v1523
        %v1525 = vlaneseq
        %v1526 = vshrl.u32 %v1525, 7
        %v1527 = vsub.s32 0, %v1526
        %v1528 = vrot.slane %v1500, %v1527
        %v1529 = vlaneseq
        %v1530 = vshrl.u32 %v1529, 7
        %v1531 = vsub.s32 0, %v1530
        %v1532 = vrot.slane %v1502, %v1531
        %v1533 = vlaneseq
        %v1534 = vshrl.u32 %v1533, 7
        %v1535 = vsub.s32 0, %v1534
        %v1536 = vrot.slane %v1504, %v1535
        %1537 = vrot.lane.b32.xlu0 %v1508, 80
        %v1538 = vpop.permute.xlu0 %1537
        %1539 = vrot.lane.b32.xlu0 %v1512, 80
        %v1540 = vpop.permute.xlu0 %1539
        %1541 = vrot.lane.b32.xlu0 %v1516, 80
        %v1542 = vpop.permute.xlu0 %1541
        %1543 = vrot.lane.b32.xlu0 %v1520, 80
        %v1544 = vpop.permute.xlu0 %1543
        %1545 = vrot.lane.b32.xlu0 %v1524, 80
        %v1546 = vpop.permute.xlu0 %1545
        %1547 = vrot.lane.b32.xlu0 %v1528, 80
        %v1548 = vpop.permute.xlu0 %1547
        %1549 = vrot.lane.b32.xlu0 %v1532, 80
        %v1550 = vpop.permute.xlu0 %1549
        %1551 = vrot.lane.b32.xlu0 %v1536, 80
        %v1552 = vpop.permute.xlu0 %1551
        %v1561 = vmul.f32 %v671, %v1538
        %v1562 = vmul.f32 %v674, %v1540
        %v1563 = vmul.f32 %v679, %v1542
        %v1564 = vmul.f32 %v682, %v1544
        %v1565 = vmul.f32 %v687, %v1546
        %v1566 = vmul.f32 %v690, %v1548
        %v1567 = vmul.f32 %v695, %v1550
        %v1568 = vmul.f32 %v698, %v1552
        %v1569 = vsel %vm716, %v1561, 0.0
        %1570 = vadd.xlane.f32.xlu0 %v1569
        %v1571 = vpop.xlane.xlu0 %1570
        %v1572 = vsel %vm716, %v1562, 0.0
        %1573 = vadd.xlane.f32.xlu0 %v1572
        %v1574 = vpop.xlane.xlu0 %1573
        %v1575 = vsel %vm716, %v1563, 0.0
        %1576 = vadd.xlane.f32.xlu0 %v1575
        %v1577 = vpop.xlane.xlu0 %1576
        %v1578 = vsel %vm716, %v1564, 0.0
        %1579 = vadd.xlane.f32.xlu0 %v1578
        %v1580 = vpop.xlane.xlu0 %1579
        %v1581 = vsel %vm716, %v1565, 0.0
        %1582 = vadd.xlane.f32.xlu0 %v1581
        %v1583 = vpop.xlane.xlu0 %1582
        %v1584 = vsel %vm716, %v1566, 0.0
        %1585 = vadd.xlane.f32.xlu0 %v1584
        %v1586 = vpop.xlane.xlu0 %1585
        %v1587 = vsel %vm716, %v1567, 0.0
        %1588 = vadd.xlane.f32.xlu0 %v1587
        %v1589 = vpop.xlane.xlu0 %1588
        %v1590 = vsel %vm716, %v1568, 0.0
        %1591 = vadd.xlane.f32.xlu0 %v1590
        %v1592 = vpop.xlane.xlu0 %1591
        %v1601 = vlaneseq
        %v1602 = vshrl.u32 %v1601, 7
        %v1603 = vsub.s32 %v703, %v1602
        %v1604 = vrot.slane %v1571, %v1603
        %v1605 = vlaneseq
        %v1606 = vshrl.u32 %v1605, 7
        %v1607 = vsub.s32 %v703, %v1606
        %v1608 = vrot.slane %v1574, %v1607
        %v1609 = vlaneseq
        %v1610 = vshrl.u32 %v1609, 7
        %v1611 = vsub.s32 %v703, %v1610
        %v1612 = vrot.slane %v1577, %v1611
        %v1613 = vlaneseq
        %v1614 = vshrl.u32 %v1613, 7
        %v1615 = vsub.s32 %v703, %v1614
        %v1616 = vrot.slane %v1580, %v1615
        %v1617 = vlaneseq
        %v1618 = vshrl.u32 %v1617, 7
        %v1619 = vsub.s32 %v703, %v1618
        %v1620 = vrot.slane %v1583, %v1619
        %v1621 = vlaneseq
        %v1622 = vshrl.u32 %v1621, 7
        %v1623 = vsub.s32 %v703, %v1622
        %v1624 = vrot.slane %v1586, %v1623
        %v1625 = vlaneseq
        %v1626 = vshrl.u32 %v1625, 7
        %v1627 = vsub.s32 %v703, %v1626
        %v1628 = vrot.slane %v1589, %v1627
        %v1629 = vlaneseq
        %v1630 = vshrl.u32 %v1629, 7
        %v1631 = vsub.s32 %v703, %v1630
        %v1632 = vrot.slane %v1592, %v1631
        %v1633 = vsel %vm781, %v1608, %v1604
        %v1634 = vsel %vm783, %v1612, %v1633
        %v1635 = vsel %vm785, %v1616, %v1634
        %v1636 = vsel %vm787, %v1620, %v1635
        %v1637 = vsel %vm789, %v1624, %v1636
        %v1638 = vsel %vm791, %v1628, %v1637
        %v1639 = vsel %vm793, %v1632, %v1638
        %v1641 = vsel %vm707, %v1639, -1e+30
        %v1642 = vsel %vm409, %v1641, -inf
        %1643 = vmax.xlane.f32.xlu0 %v1642
        %v1644 = vpop.xlane.xlu0 %1643
        %v1645 = vsub.f32 %v1641, %v1644
        %v1646 = vmul.f32 %v1645, 1.442695
        %v1647 = vpow.pop %v1646
        %v1648 = vsel %vm707, %v1647, 0.0
        %v1649 = vsel %vm409, %v1648, 0.0
        %1650 = vadd.xlane.f32.xlu0 %v1649
        %v1651 = vpop.xlane.xlu0 %1650
        %v1652 = vmax.f32 %v1651, 1e-30
        %v1653 = vrcp.pop %v1652
        %v1654 = vmul.f32 %v1648, %v1653
        %v1655 = vlaneseq
        %v1656 = vshrl.u32 %v1655, 7
        %v1657 = vsub.s32 0, %v1656
        %v1658 = vrot.slane %v1654, %v1657
        %1660 = vbcast.lane.b32.xlu0 %v1658, 256
        %v1661 = vpop.permute.xlu0 %1660
        %v1662 = vlaneseq
        %v1663 = vshrl.u32 %v1662, 7
        %v1664 = vsub.s32 1, %v1663
        %v1665 = vrot.slane %v1654, %v1664
        %1667 = vbcast.lane.b32.xlu0 %v1665, 256
        %v1668 = vpop.permute.xlu0 %1667
        %v1669 = vlaneseq
        %v1670 = vshrl.u32 %v1669, 7
        %v1671 = vsub.s32 2, %v1670
        %v1672 = vrot.slane %v1654, %v1671
        %1674 = vbcast.lane.b32.xlu0 %v1672, 256
        %v1675 = vpop.permute.xlu0 %1674
        %v1676 = vlaneseq
        %v1677 = vshrl.u32 %v1676, 7
        %v1678 = vsub.s32 3, %v1677
        %v1679 = vrot.slane %v1654, %v1678
        %1681 = vbcast.lane.b32.xlu0 %v1679, 256
        %v1682 = vpop.permute.xlu0 %1681
        %v1683 = vlaneseq
        %v1684 = vshrl.u32 %v1683, 7
        %v1685 = vsub.s32 4, %v1684
        %v1686 = vrot.slane %v1654, %v1685
        %1688 = vbcast.lane.b32.xlu0 %v1686, 256
        %v1689 = vpop.permute.xlu0 %1688
        %v1690 = vlaneseq
        %v1691 = vshrl.u32 %v1690, 7
        %v1692 = vsub.s32 5, %v1691
        %v1693 = vrot.slane %v1654, %v1692
        %1695 = vbcast.lane.b32.xlu0 %v1693, 256
        %v1696 = vpop.permute.xlu0 %1695
        %v1697 = vlaneseq
        %v1698 = vshrl.u32 %v1697, 7
        %v1699 = vsub.s32 6, %v1698
        %v1700 = vrot.slane %v1654, %v1699
        %1702 = vbcast.lane.b32.xlu0 %v1700, 256
        %v1703 = vpop.permute.xlu0 %1702
        %v1704 = vlaneseq
        %v1705 = vshrl.u32 %v1704, 7
        %v1706 = vsub.s32 7, %v1705
        %v1707 = vrot.slane %v1654, %v1706
        %1709 = vbcast.lane.b32.xlu0 %v1707, 256
        %v1710 = vpop.permute.xlu0 %1709
        %v1711 = vmul.f32 %v1661, %v574
        %v1712 = vmul.f32 %v1668, %v577
        %v1713 = vmul.f32 %v1675, %v582
        %v1714 = vmul.f32 %v1682, %v585
        %v1715 = vmul.f32 %v1689, %v590
        %v1716 = vmul.f32 %v1696, %v593
        %v1717 = vmul.f32 %v1703, %v598
        %v1718 = vmul.f32 %v1710, %v601
        %v1719 = vsel %vm526, %v1711, 0.0
        %v1720 = vrot.slane %v1719, 4
        %v1721 = vadd.f32 %v1719, %v1720
        %v1722 = vrot.slane %v1721, 2
        %v1723 = vadd.f32 %v1721, %v1722
        %v1724 = vrot.slane %v1723, 1
        %v1725 = vadd.f32 %v1723, %v1724
        %v1726 = vsel %vm526, %v1712, 0.0
        %v1727 = vrot.slane %v1726, 4
        %v1728 = vadd.f32 %v1726, %v1727
        %v1729 = vrot.slane %v1728, 2
        %v1730 = vadd.f32 %v1728, %v1729
        %v1731 = vrot.slane %v1730, 1
        %v1732 = vadd.f32 %v1730, %v1731
        %v1733 = vsel %vm526, %v1713, 0.0
        %v1734 = vrot.slane %v1733, 4
        %v1735 = vadd.f32 %v1733, %v1734
        %v1736 = vrot.slane %v1735, 2
        %v1737 = vadd.f32 %v1735, %v1736
        %v1738 = vrot.slane %v1737, 1
        %v1739 = vadd.f32 %v1737, %v1738
        %v1740 = vsel %vm526, %v1714, 0.0
        %v1741 = vrot.slane %v1740, 4
        %v1742 = vadd.f32 %v1740, %v1741
        %v1743 = vrot.slane %v1742, 2
        %v1744 = vadd.f32 %v1742, %v1743
        %v1745 = vrot.slane %v1744, 1
        %v1746 = vadd.f32 %v1744, %v1745
        %v1747 = vsel %vm526, %v1715, 0.0
        %v1748 = vrot.slane %v1747, 4
        %v1749 = vadd.f32 %v1747, %v1748
        %v1750 = vrot.slane %v1749, 2
        %v1751 = vadd.f32 %v1749, %v1750
        %v1752 = vrot.slane %v1751, 1
        %v1753 = vadd.f32 %v1751, %v1752
        %v1754 = vsel %vm526, %v1716, 0.0
        %v1755 = vrot.slane %v1754, 4
        %v1756 = vadd.f32 %v1754, %v1755
        %v1757 = vrot.slane %v1756, 2
        %v1758 = vadd.f32 %v1756, %v1757
        %v1759 = vrot.slane %v1758, 1
        %v1760 = vadd.f32 %v1758, %v1759
        %v1761 = vsel %vm526, %v1717, 0.0
        %v1762 = vrot.slane %v1761, 4
        %v1763 = vadd.f32 %v1761, %v1762
        %v1764 = vrot.slane %v1763, 2
        %v1765 = vadd.f32 %v1763, %v1764
        %v1766 = vrot.slane %v1765, 1
        %v1767 = vadd.f32 %v1765, %v1766
        %v1768 = vsel %vm526, %v1718, 0.0
        %v1769 = vrot.slane %v1768, 4
        %v1770 = vadd.f32 %v1768, %v1769
        %v1771 = vrot.slane %v1770, 2
        %v1772 = vadd.f32 %v1770, %v1771
        %v1773 = vrot.slane %v1772, 1
        %v1774 = vadd.f32 %v1772, %v1773
        %v1783 = vsel %vm781, %v1732, %v1725
        %v1784 = vsel %vm783, %v1739, %v1783
        %v1785 = vsel %vm785, %v1746, %v1784
        %v1786 = vsel %vm787, %v1753, %v1785
        %v1787 = vsel %vm789, %v1760, %v1786
        %v1788 = vsel %vm791, %v1767, %v1787
        %v1789 = vsel %vm793, %v1774, %v1788
        %1791 = vrot.lane.b32.xlu0 %v1454, 112
        %v1792 = vpop.permute.xlu0 %1791
        %v1794 = vsel %vm526, %v1789, %v1792
        %v1795 = vpack.c.bf16 %v1794, %v1794
        %v1797 = vsel %vm979, %v1795, 0
        %1799 = vmatprep.subr.bf16.mxu0 0
        %1800 = vmatpush1.bf16.msra.mxu0 0
        %1801 = vmatprep.subr.bf16.mxu0 0
        %1802 = vmatpush1.bf16.msra.mxu0 0
        %1803 = vmatprep.subr.bf16.mxu0 0
        %1804 = vmatpush1.bf16.msra.mxu0 0
        %1805 = vmatprep.subr.bf16.mxu0 0
        %1806 = vmatpush1.bf16.msra.mxu0 0
        %1807 = vmatprep.subr.bf16.mxu0 0
        %1808 = vmatpush1.bf16.msra.mxu0 0
        %1809 = vmatprep.subr.bf16.mxu0 0
        %1810 = vmatpush1.bf16.msra.mxu0 %v975
        %1811 = vmatprep.subr.bf16.mxu0 0
        %1812 = vmatpush1.bf16.msra.mxu0 %v974
        %1813 = vmatprep.subr.bf16.mxu0 0
        %1814 = vmatpush1.bf16.msra.mxu0 %v973
        %1815 = vmatprep.subr.bf16.mxu0 0
        %1816 = vmatpush2.bf16.msra.mxu0 0
        %1817 = vmatprep.subr.bf16.mxu0 0
        %1818 = vmatpush2.bf16.msra.mxu0 0
        %1819 = vmatprep.subr.bf16.mxu0 0
        %1820 = vmatpush2.bf16.msra.mxu0 0
        %1821 = vmatprep.subr.bf16.mxu0 0
        %1822 = vmatpush2.bf16.msra.mxu0 0
        %1823 = vmatprep.subr.bf16.mxu0 0
        %1824 = vmatpush2.bf16.msra.mxu0 0
        %1825 = vmatprep.subr.bf16.mxu0 0
        %1826 = vmatpush2.bf16.msra.mxu0 0
        %1827 = vmatprep.subr.bf16.mxu0 0
        %1828 = vmatpush2.bf16.msra.mxu0 0
        %1829 = vmatprep.subr.bf16.mxu0 0
        %1830 = vmatpush2.bf16.msra.mxu0 0
        %1831 = vmatprep.mubr.bf16.mxu0 0
        %1832 = vmatmul.mubr.bf16.gmra.mxu0 %v1797
        %v1833 = vpop.f32.mrf.mxu0
        %v1834 = vadd.f32 %v959, %v1833
        %v1835 = vpop.f32.mrf.mxu0
        %v1836 = vpop.f32.mrf.mxu0
        %v1837 = vpop.f32.mrf.mxu0
        %1838 = vdwg.mxu0
        %v1839 = vxor.u32 %v1834, 2147483648
        %v1840 = vmul.f32 %v1839, 1.442695
        %v1841 = vpow.pop %v1840
        %v1842 = vadd.f32 %v1841, 1.0
        %v1843 = vrcp.pop %v1842
        %v1844 = vmul.f32 1.0, %v1843
        %v1845 = vtanh.pop %v1834
        %v1846 = vmul.f32 %v1844, %v1448
        %1848 = vrot.lane.b32.xlu0 %v1845, 96
        %v1849 = vpop.permute.xlu0 %1848
        %v1851 = vmul.f32 %v1844, %v1849
        %1853 = vrot.lane.b32.xlu0 %v1851, 16
        %v1854 = vpop.permute.xlu0 %1853
        %v1856 = vadd.f32 %v1846, %v1854
        %v1857 = vtanh.pop %v1856
        %1859 = vrot.lane.b32.xlu0 %v1857, 32
        %v1860 = vpop.permute.xlu0 %1859
        %v1862 = vmul.f32 %v1844, %v1860
        %vm1863 = vcmp.gt.s32.totalorder %v701, 0
        %v1864 = vsel %vm1863, 1, 0
        %v1865 = vcvt.s32.f32 %v1864
        %1867 = vset.pattern.permute.xlu0 0
        %1868 = vperm.xlu0 %1867, %v1865
        %v1869 = vpop.permute.xlu0 %1868
        %v1870 = vrot.slane %v1869, 1
        %v1871 = vrot.slane %v1869, 2
        %v1872 = vrot.slane %v1869, 3
        %v1873 = vrot.slane %v1869, 4
        %v1874 = vrot.slane %v1869, 5
        %v1875 = vrot.slane %v1869, 6
        %v1876 = vrot.slane %v1869, 7
        %v1885 = vmul.f32 %v1725, %v1869
        %v1886 = vmul.f32 %v1732, %v1870
        %v1887 = vmul.f32 %v1739, %v1871
        %v1888 = vmul.f32 %v1746, %v1872
        %v1889 = vmul.f32 %v1753, %v1873
        %v1890 = vmul.f32 %v1760, %v1874
        %v1891 = vmul.f32 %v1767, %v1875
        %v1892 = vmul.f32 %v1774, %v1876
        %v1901 = vrot.slane %v1886, 7
        %v1902 = vsel %vm781, %v1901, %v1885
        %v1903 = vrot.slane %v1887, 6
        %v1904 = vsel %vm783, %v1903, %v1902
        %v1905 = vrot.slane %v1888, 5
        %v1906 = vsel %vm785, %v1905, %v1904
        %v1907 = vrot.slane %v1889, 4
        %v1908 = vsel %vm787, %v1907, %v1906
        %v1909 = vrot.slane %v1890, 3
        %v1910 = vsel %vm789, %v1909, %v1908
        %v1911 = vrot.slane %v1891, 2
        %v1912 = vsel %vm791, %v1911, %v1910
        %v1913 = vrot.slane %v1892, 1
        %v1914 = vsel %vm793, %v1913, %v1912
        %1916 = vst.msk [vmem:[%s370] sm:$0xff] %vm526, %v1914
        %v1917 = vmul.f32 %v1862, %v1869
        %1919 = vrot.lane.b32.xlu0 %v1917, 80
        %v1920 = vpop.permute.xlu0 %1919
        %1922 = vst.msk [vmem:[%s377] sm:$0xff] %vm716, %v1920
        %s1923 = sand.u32 %s235, 1
        %s1924 = scalar_lea.sflag [#allocation3], %s1923
        %s1925 = sand.u32 %s235, 1
        %s1926 = smul.addr %s1925, 8
        %s1927 = scalar_lea.vmem [#allocation2], %s1926
        %s1928 = sand.u32 %s261, 1
        %s1929 = scalar_lea.sflag [#allocation5], %s1928
        %s1930 = sand.u32 %s261, 1
        %s1931 = smul.addr %s1930, 8
        %s1932 = scalar_lea.vmem [#allocation4], %s1931
        // Predicated region
        $region57: #{tpu_custom_call.1} parent=55 // pred_check
          %p1933 = pneg %p245
        $region58: #{tpu_custom_call.1} parent=55 // pred_check_branch
          %1935 = sbr.rel (%p1933) target = $region60
        $region59: #{tpu_custom_call.1} parent=55 // pred_region
          %s1937 = ssub.s32 128, 128
          %1938 = vsyncadd %s1924, %s1937
          %s1939 = smul.addr %s28, 128
          %s1940 = scalar_lea.hbm %s9, %s1939
          %s1942 = sshll.u32 %s1927, 4
          %s1943 = int_to_ptr.vmem [resolvable:$true] %s1942
          %1945 = dma.vmem_to_hbm [thread:$0]  %s1943, 128, %s1940, %s1924
        $region60: #{tpu_custom_call.1} parent=55 // pred_fallthru
          _
        // Predicated region
        $region61: #{tpu_custom_call.1} parent=55 // pred_check
          %p1946 = pneg %p271
        $region62: #{tpu_custom_call.1} parent=55 // pred_check_branch
          %1948 = sbr.rel (%p1946) target = $region64
        $region63: #{tpu_custom_call.1} parent=55 // pred_region
          %s1950 = ssub.s32 128, 128
          %1951 = vsyncadd %s1929, %s1950
          %s1952 = smul.addr %s28, 128
          %s1953 = scalar_lea.hbm %s10, %s1952
          %s1955 = sshll.u32 %s1932, 4
          %s1956 = int_to_ptr.vmem [resolvable:$true] %s1955
          %1958 = dma.vmem_to_hbm [thread:$0]  %s1956, 128, %s1953, %s1929
        $region64: #{tpu_custom_call.1} parent=55 // pred_fallthru
          _
      $region56: #{tpu_custom_call.1} parent=5 // pred_fallthru
        _
      %p1959 = scmp.le.s32.totalorder 2, %s23
      // Predicated region
      $region65: #{tpu_custom_call.1} parent=5 // pred_check
        %p1960 = pneg %p1959
      $region66: #{tpu_custom_call.1} parent=5 // pred_check_branch
        %1962 = sbr.rel (%p1960) target = $region68
      $region67: #{tpu_custom_call.1} parent=5 // pred_region
        %s1963 = ssub.s32 %s23, 2
        // Predicated region
        $region69: #{tpu_custom_call.1} parent=67 // pred_check
          %p1964 = pneg %p251
        $region70: #{tpu_custom_call.1} parent=67 // pred_check_branch
          %1966 = sbr.rel (%p1964) target = $region72
        $region71: #{tpu_custom_call.1} parent=67 // pred_region
          %s1967 = sand.u32 %s236, 1
          %s1968 = scalar_lea.sflag [#allocation3], %s1967
          %s1969 = sand.u32 %s236, 1
          %s1970 = smul.addr %s1969, 8
          %s1971 = scalar_lea.vmem [#allocation2], %s1970
          %1972 = dma.done %s1968, 128
        $region72: #{tpu_custom_call.1} parent=67 // pred_fallthru
          _
        // Predicated region
        $region73: #{tpu_custom_call.1} parent=67 // pred_check
          %p1973 = pneg %p277
        $region74: #{tpu_custom_call.1} parent=67 // pred_check_branch
          %1975 = sbr.rel (%p1973) target = $region76
        $region75: #{tpu_custom_call.1} parent=67 // pred_region
          %s1976 = sand.u32 %s262, 1
          %s1977 = scalar_lea.sflag [#allocation5], %s1976
          %s1978 = sand.u32 %s262, 1
          %s1979 = smul.addr %s1978, 8
          %s1980 = scalar_lea.vmem [#allocation4], %s1979
          %1981 = dma.done %s1977, 128
        $region76: #{tpu_custom_call.1} parent=67 // pred_fallthru
          _
      $region68: #{tpu_custom_call.1} parent=5 // pred_fallthru
        _
    $region6: #{tpu_custom_call.1} parent=1 // loop_footer
      %s27 = sadd.s32 1, %s23
    $region7: #{tpu_custom_call.1} parent=1 // loop_footer_branch
      %22 = sbr.rel target = $region3
    $region8: #{tpu_custom_call.1} parent=1 // loop_exit
      _
    %1982 = vsyncpa [#allocation3], 1
    %s1983 = scalar_lea.sflag [#allocation3], 1
    %1984 = vsyncpa %s1983, 1
    %1985 = vsyncpa [#allocation5], 1
    %s1986 = scalar_lea.sflag [#allocation5], 1
    %1987 = vsyncpa %s1986, 1

</llo_original>
